<compile_context>
chip_gen: v7x
topology: tpu7x:2x2x1
jax: 0.10.0
libtpu: 0.0.40
codegen_flags: <defaults>
</compile_context>

<pallas_src>
import functools

import jax
import jax.numpy as jnp
from jax import lax
from jax.experimental import pallas as pl
from jax.experimental.pallas import tpu as pltpu
import numpy as np


def biattention_kernel(v_ref, q_ref, mbias_ref,
                       wv_ref, bv_ref, wq_ref, bq_ref, hw_ref,
                       atten_ref, logits_ref,
                       *, Bt, Nv, Nq):
    G, H = hw_ref.shape
    NvNq = Nv * Nq

    # ---- FCNet: relu(x @ W + b); inputs arrive pre-flattened (Bt*N, D) ----
    v_ = jnp.maximum(
        jnp.dot(v_ref[...], wv_ref[...], preferred_element_type=jnp.float32)
        + bv_ref[...], 0.0)                                    # (Bt*Nv, H)
    q_ = jnp.maximum(
        jnp.dot(q_ref[...], wq_ref[...], preferred_element_type=jnp.float32)
        + bq_ref[...], 0.0)                                    # (Bt*Nq, H)

    # ---- fused bilinear term: one MXU contraction for the whole batch block ----
    # outer[(b*Nv+i)*Nq + j, h] = v_[b*Nv+i, h] * q_[b*Nq+j, h]
    outer = (v_.reshape(Bt, Nv, 1, H) *
             q_.reshape(Bt, 1, Nq, H)).reshape(Bt * NvNq, H)   # (Bt*NvNq, H)

    # hw (G,H) x outer (Bt*NvNq,H)^T -> (G, Bt*NvNq); lane-group b of the result
    # is the flattened (Nv*Nq) softmax axis of batch element b (lane-dense).
    logits_all = lax.dot_general(
        hw_ref[...], outer,
        dimension_numbers=(((1,), (1,)), ((), ())),
        preferred_element_type=jnp.float32)                    # (G, Bt*NvNq)

    # ---- per batch element: 128-aligned lane slice -> bias/mask add, softmax ----
    # mbias rows are ordered b*G + g and already contain h_bias + (0 / -inf) mask.
    # Stores land in a dense (Bt*G, NvNq) output block -> contiguous HBM writeback.
    # TODO(synk): switch this static unroll to lax.fori_loop if Bt is made large.
    for b in range(Bt):
        rows = slice(b * G, (b + 1) * G)
        seg = logits_all[:, b * NvNq:(b + 1) * NvNq] + mbias_ref[rows, :]  # (G, NvNq)
        logits_ref[rows, :] = seg
        m = jnp.max(seg, axis=-1, keepdims=True)               # (G, 1)
        e = jnp.exp(seg - m)
        s = jnp.sum(e, axis=-1, keepdims=True)                 # (G, 1)
        atten_ref[rows, :] = e * pl.reciprocal(s, approx=True)


def _pick_block_batch(B, Nv, Nq, G):
    """Whole batch per grid step unless B is large; keep tiles (8,128)-legal."""
    target = max(8, 256 // max(Nv, 1))   # aim for ~256 MXU rows in the FCNet matmul
    if B <= target:
        return B
    ok = [d for d in range(1, B + 1)
          if B % d == 0 and (d == B or ((d * Nv) % 8 == 0 and (d * Nq) % 8 == 0
                                        and (d * G) % 8 == 0))]
    small = [d for d in ok if d <= target]
    return max(small) if small else min(ok)


def bi_attention(v, q, v_mask, q_mask, params, glimpses, *, block_batch=None):
    """Returns (atten [B,G,Nv,Nq], logits [B,G,Nv,Nq]) like BiAttention.forward."""
    del q_mask  # not used by the reference forward pass
    B, Nv, Dv = v.shape
    _, Nq, Dq = q.shape
    H = params["wv"].shape[1]
    G = glimpses
    NvNq = Nv * Nq

    Bt = _pick_block_batch(B, Nv, Nq, G) if block_batch is None else block_batch
    assert B % Bt == 0
    NB = B // Bt

    # Wrapper-side flattening (free XLA reshape): kernel sees clean 2-D blocks.
    v2d = v.reshape(B * Nv, Dv).astype(jnp.float32)
    q2d = q.reshape(B * Nq, Dq).astype(jnp.float32)

    # Additive bias, precomputed on host and laid out to match the (B*G, Nv*Nq)
    # output rows (row = b*G + g): h_bias[g] + (0 where object valid, -inf padded).
    # NOTE: a fully-masked row yields NaN attention, same as the PyTorch module.
    maskb = jnp.where(v_mask.astype(jnp.float32)[:, :, None] > 0,
                      jnp.float32(0.0), jnp.float32(-jnp.inf))          # (B, Nv, 1)
    maskb = jnp.broadcast_to(maskb, (B, Nv, Nq)).reshape(B, 1, NvNq)
    hb = params["h_bias"].reshape(1, G, 1).astype(jnp.float32)
    mbias = (maskb + hb).reshape(B * G, NvNq)                           # (B*G, NvNq)

    out_shape = (
        jax.ShapeDtypeStruct((B * G, NvNq), jnp.float32),   # atten  (dense slab)
        jax.ShapeDtypeStruct((B * G, NvNq), jnp.float32),   # logits (dense slab)
    )

    grid_spec = pltpu.PrefetchScalarGridSpec(
        num_scalar_prefetch=0,
        grid=(NB,),
        in_specs=[
            pl.BlockSpec((Bt * Nv, Dv), lambda n: (n, 0)),      # v (flattened)
            pl.BlockSpec((Bt * Nq, Dq), lambda n: (n, 0)),      # q (flattened)
            pl.BlockSpec((Bt * G, NvNq), lambda n: (n, 0)),     # mask + h_bias
            pl.BlockSpec((Dv, H), lambda n: (0, 0)),            # Wv
            pl.BlockSpec((1, H), lambda n: (0, 0)),             # bv
            pl.BlockSpec((Dq, H), lambda n: (0, 0)),            # Wq
            pl.BlockSpec((1, H), lambda n: (0, 0)),             # bq
            pl.BlockSpec((G, H), lambda n: (0, 0)),             # h_weight
        ],
        out_specs=[
            pl.BlockSpec((Bt * G, NvNq), lambda n: (n, 0)),
            pl.BlockSpec((Bt * G, NvNq), lambda n: (n, 0)),
        ],
    )

    kernel = functools.partial(biattention_kernel, Bt=Bt, Nv=Nv, Nq=Nq)
    atten_flat, logits_flat = pl.pallas_call(
        kernel,
        out_shape=out_shape,
        grid_spec=grid_spec,
        compiler_params=pltpu.CompilerParams(dimension_semantics=("parallel",)),
    )(v2d, q2d, mbias,
      params["wv"], params["bv"], params["wq"], params["bq"], params["h_weight"])

    # Splitting the minor dims back out is a free reshape in XLA.
    return (atten_flat.reshape(B, G, Nv, Nq),
            logits_flat.reshape(B, G, Nv, Nq))


def reference(v, q, v_mask, params, G):
    """Plain-JAX reproduction of the PyTorch forward for verification."""
    v_ = jax.nn.relu(v @ params["wv"] + params["bv"][0])      # (B,Nv,H)
    q_ = jax.nn.relu(q @ params["wq"] + params["bq"][0])      # (B,Nq,H)
    v_ = v_[:, None]                                          # (B,1,Nv,H)
    q_ = q_[:, None]                                          # (B,1,Nq,H)
    hw = params["h_weight"].reshape(1, G, 1, -1)
    h = v_ * hw                                               # (B,G,Nv,H)
    logits = jnp.matmul(h, jnp.swapaxes(q_, 2, 3))
    logits = logits + params["h_bias"].reshape(1, G, 1, 1)
    mask0 = (v_mask[:, None, :, None] == 0)
    logits = jnp.where(mask0, -jnp.inf, logits)
    B, _, Nv, Nq = logits.shape
    atten = jax.nn.softmax(logits.reshape(B, G, Nv * Nq), axis=2)
    return atten.reshape(B, G, Nv, Nq), logits


if __name__ == "__main__":
    # Small shapes consistent with the module's forward:
    #   v: [batch, num_obj, v_features], q: [batch, que_len, q_features]
    # Nv * Nq = 128 -> exact lane width for the flattened softmax axis.
    B, Nv, Nq = 8, 16, 8
    v_features, q_features = 32, 24
    mid_features, glimpses = 16, 2
    H = int(mid_features * 3)  # hidden_aug = 3

    key = jax.random.PRNGKey(0)
    kv, kq, kwv, kbv, kwq, kbq, khw, khb = jax.random.split(key, 8)

    v = jax.random.normal(kv, (B, Nv, v_features), dtype=jnp.float32)
    q = jax.random.normal(kq, (B, Nq, q_features), dtype=jnp.float32)

    # Deterministic masks: varying numbers of valid objects (>= 1 each).
    obj_counts = jnp.array([16, 12, 9, 5, 1, 16, 7, 3], dtype=jnp.int32)
    v_mask = (jnp.arange(Nv)[None, :] < obj_counts[:, None]).astype(jnp.float32)
    q_mask = jnp.ones((B, Nq), dtype=jnp.float32)  # unused by forward

    # Deterministic synthetic parameters (weight-norm folded; .normal_() init).
    params = {
        "wv": jax.random.normal(kwv, (v_features, H), jnp.float32) * 0.1,
        "bv": jax.random.normal(kbv, (1, H), jnp.float32) * 0.1,
        "wq": jax.random.normal(kwq, (q_features, H), jnp.float32) * 0.1,
        "bq": jax.random.normal(kbq, (1, H), jnp.float32) * 0.1,
        "h_weight": jax.random.normal(khw, (glimpses, H), jnp.float32),
        "h_bias": jax.random.normal(khb, (glimpses, 1), jnp.float32),
    }

    atten, logits = bi_attention(v, q, v_mask, q_mask, params, glimpses)
    jax.block_until_ready(atten)
    jax.block_until_ready(logits)

    atten_exp, logits_exp = reference(v, q, v_mask, params, glimpses)
    assert atten.shape == (B, glimpses, Nv, Nq)
    assert logits.shape == (B, glimpses, Nv, Nq)
    # atten tolerance slightly relaxed for the EUP approximate reciprocal.
    assert np.allclose(np.asarray(atten), np.asarray(atten_exp),
                       atol=2e-5, rtol=5e-3)
    assert np.allclose(np.asarray(logits), np.asarray(logits_exp),
                       atol=1e-4, rtol=1e-4)

    print("KERNEL_OK")
</pallas_src>

<mosaic_0001>
module attributes {stable_mosaic.version = 11 : i64} {
  func.func @biattention_kernel(%arg0: i32, %arg1: memref<128x32xf32, #tpu.memory_space<vmem>>, %arg2: memref<64x24xf32, #tpu.memory_space<vmem>>, %arg3: memref<16x128xf32, #tpu.memory_space<vmem>>, %arg4: memref<32x48xf32, #tpu.memory_space<vmem>>, %arg5: memref<1x48xf32, #tpu.memory_space<vmem>>, %arg6: memref<24x48xf32, #tpu.memory_space<vmem>>, %arg7: memref<1x48xf32, #tpu.memory_space<vmem>>, %arg8: memref<2x48xf32, #tpu.memory_space<vmem>>, %arg9: memref<16x128xf32, #tpu.memory_space<vmem>>, %arg10: memref<16x128xf32, #tpu.memory_space<vmem>>) attributes {dimension_semantics = [#tpu.dimension_semantics<parallel>], iteration_bounds = array<i64: 1>, scalar_prefetch = 0 : i64, scratch_operands = 0 : i64, tpu.core_type = #tpu.core_type<tc>, window_params = [{transform_indices = @transform_0, window_bounds = array<i64: 128, 32>}, {transform_indices = @transform_1, window_bounds = array<i64: 64, 24>}, {transform_indices = @transform_2, window_bounds = array<i64: 16, 128>}, {pipeline_mode = #tpu.pipeline_mode<synchronous>, transform_indices = @transform_3, window_bounds = array<i64: 32, 48>}, {pipeline_mode = #tpu.pipeline_mode<synchronous>, transform_indices = @transform_4, window_bounds = array<i64: 1, 48>}, {pipeline_mode = #tpu.pipeline_mode<synchronous>, transform_indices = @transform_5, window_bounds = array<i64: 24, 48>}, {pipeline_mode = #tpu.pipeline_mode<synchronous>, transform_indices = @transform_6, window_bounds = array<i64: 1, 48>}, {pipeline_mode = #tpu.pipeline_mode<synchronous>, transform_indices = @transform_7, window_bounds = array<i64: 2, 48>}, {transform_indices = @transform_8, window_bounds = array<i64: 16, 128>}, {transform_indices = @transform_9, window_bounds = array<i64: 16, 128>}]} {
    %c0 = arith.constant 0 : index
    %c0_0 = arith.constant 0 : index
    %0 = vector.load %arg1[%c0, %c0_0] : memref<128x32xf32, #tpu.memory_space<vmem>>, vector<128x32xf32>
    %c0_1 = arith.constant 0 : index
    %c0_2 = arith.constant 0 : index
    %1 = vector.load %arg4[%c0_1, %c0_2] : memref<32x48xf32, #tpu.memory_space<vmem>>, vector<32x48xf32>
    %cst = arith.constant dense<0.000000e+00> : vector<128x48xf32>
    %2 = tpu.matmul %0, %1, %cst {dimension_numbers = #tpu.dot_dimension_numbers<[1], [0], [0], [1], [0, 0, 1, 1], [], []>} : vector<128x32xf32>, vector<32x48xf32>, vector<128x48xf32> -> vector<128x48xf32>
    %c0_3 = arith.constant 0 : index
    %c0_4 = arith.constant 0 : index
    %3 = vector.load %arg5[%c0_3, %c0_4] : memref<1x48xf32, #tpu.memory_space<vmem>>, vector<1x48xf32>
    %4 = vector.broadcast %3 : vector<1x48xf32> to vector<128x48xf32>
    %5 = arith.addf %2, %4 : vector<128x48xf32>
    %cst_5 = arith.constant 0.000000e+00 : f32
    %6 = vector.broadcast %cst_5 : f32 to vector<128x48xf32>
    %7 = arith.maximumf %5, %6 : vector<128x48xf32>
    %c0_6 = arith.constant 0 : index
    %c0_7 = arith.constant 0 : index
    %8 = vector.load %arg2[%c0_6, %c0_7] : memref<64x24xf32, #tpu.memory_space<vmem>>, vector<64x24xf32>
    %c0_8 = arith.constant 0 : index
    %c0_9 = arith.constant 0 : index
    %9 = vector.load %arg6[%c0_8, %c0_9] : memref<24x48xf32, #tpu.memory_space<vmem>>, vector<24x48xf32>
    %cst_10 = arith.constant dense<0.000000e+00> : vector<64x48xf32>
    %10 = tpu.matmul %8, %9, %cst_10 {dimension_numbers = #tpu.dot_dimension_numbers<[1], [0], [0], [1], [0, 0, 1, 1], [], []>} : vector<64x24xf32>, vector<24x48xf32>, vector<64x48xf32> -> vector<64x48xf32>
    %c0_11 = arith.constant 0 : index
    %c0_12 = arith.constant 0 : index
    %11 = vector.load %arg7[%c0_11, %c0_12] : memref<1x48xf32, #tpu.memory_space<vmem>>, vector<1x48xf32>
    %12 = vector.broadcast %11 : vector<1x48xf32> to vector<64x48xf32>
    %13 = arith.addf %10, %12 : vector<64x48xf32>
    %cst_13 = arith.constant 0.000000e+00 : f32
    %14 = vector.broadcast %cst_13 : f32 to vector<64x48xf32>
    %15 = arith.maximumf %13, %14 : vector<64x48xf32>
    %16 = vector.shape_cast %7 : vector<128x48xf32> to vector<8x16x1x48xf32>
    %17 = vector.shape_cast %15 : vector<64x48xf32> to vector<8x1x8x48xf32>
    %18 = vector.broadcast %16 : vector<8x16x1x48xf32> to vector<8x16x8x48xf32>
    %19 = vector.broadcast %17 : vector<8x1x8x48xf32> to vector<8x16x8x48xf32>
    %20 = arith.mulf %18, %19 : vector<8x16x8x48xf32>
    %21 = vector.shape_cast %20 : vector<8x16x8x48xf32> to vector<1024x48xf32>
    %c0_14 = arith.constant 0 : index
    %c0_15 = arith.constant 0 : index
    %22 = vector.load %arg8[%c0_14, %c0_15] : memref<2x48xf32, #tpu.memory_space<vmem>>, vector<2x48xf32>
    %cst_16 = arith.constant dense<0.000000e+00> : vector<2x1024xf32>
    %23 = tpu.matmul %22, %21, %cst_16 {dimension_numbers = #tpu.dot_dimension_numbers<[1], [1], [0], [0], [0, 0, 1, 0], [], []>} : vector<2x48xf32>, vector<1024x48xf32>, vector<2x1024xf32> -> vector<2x1024xf32>
    %24 = vector.extract_strided_slice %23 {offsets = [0, 0], sizes = [2, 128], strides = [1, 1]} : vector<2x1024xf32> to vector<2x128xf32>
    %c0_17 = arith.constant 0 : index
    %c0_18 = arith.constant 0 : index
    %25 = vector.load %arg3[%c0_17, %c0_18] : memref<16x128xf32, #tpu.memory_space<vmem>>, vector<2x128xf32>
    %26 = arith.addf %24, %25 : vector<2x128xf32>
    %c0_19 = arith.constant 0 : index
    %c0_20 = arith.constant 0 : index
    %27 = vector.load %arg10[%c0_19, %c0_20] : memref<16x128xf32, #tpu.memory_space<vmem>>, vector<2x128xf32>
    tpu.vector_store %arg10[%c0_19, %c0_20], %26 {strides = array<i32>} : memref<16x128xf32, #tpu.memory_space<vmem>>, vector<2x128xf32>,
    %cst_21 = arith.constant dense<0xFF800000> : vector<2xf32>
    %28 = vector.multi_reduction <maximumf>, %26, %cst_21 [1] : vector<2x128xf32> to vector<2xf32>
    %29 = vector.shape_cast %28 : vector<2xf32> to vector<2x1xf32>
    %30 = vector.broadcast %29 : vector<2x1xf32> to vector<2x128xf32>
    %31 = arith.subf %26, %30 : vector<2x128xf32>
    %32 = math.exp %31 : vector<2x128xf32>
    %cst_22 = arith.constant dense<0.000000e+00> : vector<2xf32>
    %33 = vector.multi_reduction <add>, %32, %cst_22 [1] : vector<2x128xf32> to vector<2xf32>
    %34 = vector.shape_cast %33 : vector<2xf32> to vector<2x1xf32>
    %35 = tpu.reciprocal %34 {approx = true} : vector<2x1xf32> -> vector<2x1xf32>
    %36 = vector.broadcast %35 : vector<2x1xf32> to vector<2x128xf32>
    %37 = arith.mulf %32, %36 : vector<2x128xf32>
    %c0_23 = arith.constant 0 : index
    %c0_24 = arith.constant 0 : index
    %38 = vector.load %arg9[%c0_23, %c0_24] : memref<16x128xf32, #tpu.memory_space<vmem>>, vector<2x128xf32>
    tpu.vector_store %arg9[%c0_23, %c0_24], %37 {strides = array<i32>} : memref<16x128xf32, #tpu.memory_space<vmem>>, vector<2x128xf32>,
    %39 = vector.extract_strided_slice %23 {offsets = [0, 128], sizes = [2, 128], strides = [1, 1]} : vector<2x1024xf32> to vector<2x128xf32>
    %c2 = arith.constant 2 : index
    %c0_25 = arith.constant 0 : index
    %40 = vector.load %arg3[%c2, %c0_25] : memref<16x128xf32, #tpu.memory_space<vmem>>, vector<2x128xf32>
    %41 = arith.addf %39, %40 : vector<2x128xf32>
    %c2_26 = arith.constant 2 : index
    %c0_27 = arith.constant 0 : index
    %42 = vector.load %arg10[%c2_26, %c0_27] : memref<16x128xf32, #tpu.memory_space<vmem>>, vector<2x128xf32>
    tpu.vector_store %arg10[%c2_26, %c0_27], %41 {strides = array<i32>} : memref<16x128xf32, #tpu.memory_space<vmem>>, vector<2x128xf32>,
    %cst_28 = arith.constant dense<0xFF800000> : vector<2xf32>
    %43 = vector.multi_reduction <maximumf>, %41, %cst_28 [1] : vector<2x128xf32> to vector<2xf32>
    %44 = vector.shape_cast %43 : vector<2xf32> to vector<2x1xf32>
    %45 = vector.broadcast %44 : vector<2x1xf32> to vector<2x128xf32>
    %46 = arith.subf %41, %45 : vector<2x128xf32>
    %47 = math.exp %46 : vector<2x128xf32>
    %cst_29 = arith.constant dense<0.000000e+00> : vector<2xf32>
    %48 = vector.multi_reduction <add>, %47, %cst_29 [1] : vector<2x128xf32> to vector<2xf32>
    %49 = vector.shape_cast %48 : vector<2xf32> to vector<2x1xf32>
    %50 = tpu.reciprocal %49 {approx = true} : vector<2x1xf32> -> vector<2x1xf32>
    %51 = vector.broadcast %50 : vector<2x1xf32> to vector<2x128xf32>
    %52 = arith.mulf %47, %51 : vector<2x128xf32>
    %c2_30 = arith.constant 2 : index
    %c0_31 = arith.constant 0 : index
    %53 = vector.load %arg9[%c2_30, %c0_31] : memref<16x128xf32, #tpu.memory_space<vmem>>, vector<2x128xf32>
    tpu.vector_store %arg9[%c2_30, %c0_31], %52 {strides = array<i32>} : memref<16x128xf32, #tpu.memory_space<vmem>>, vector<2x128xf32>,
    %54 = vector.extract_strided_slice %23 {offsets = [0, 256], sizes = [2, 128], strides = [1, 1]} : vector<2x1024xf32> to vector<2x128xf32>
    %c4 = arith.constant 4 : index
    %c0_32 = arith.constant 0 : index
    %55 = vector.load %arg3[%c4, %c0_32] : memref<16x128xf32, #tpu.memory_space<vmem>>, vector<2x128xf32>
    %56 = arith.addf %54, %55 : vector<2x128xf32>
    %c4_33 = arith.constant 4 : index
    %c0_34 = arith.constant 0 : index
    %57 = vector.load %arg10[%c4_33, %c0_34] : memref<16x128xf32, #tpu.memory_space<vmem>>, vector<2x128xf32>
    tpu.vector_store %arg10[%c4_33, %c0_34], %56 {strides = array<i32>} : memref<16x128xf32, #tpu.memory_space<vmem>>, vector<2x128xf32>,
    %cst_35 = arith.constant dense<0xFF800000> : vector<2xf32>
    %58 = vector.multi_reduction <maximumf>, %56, %cst_35 [1] : vector<2x128xf32> to vector<2xf32>
    %59 = vector.shape_cast %58 : vector<2xf32> to vector<2x1xf32>
    %60 = vector.broadcast %59 : vector<2x1xf32> to vector<2x128xf32>
    %61 = arith.subf %56, %60 : vector<2x128xf32>
    %62 = math.exp %61 : vector<2x128xf32>
    %cst_36 = arith.constant dense<0.000000e+00> : vector<2xf32>
    %63 = vector.multi_reduction <add>, %62, %cst_36 [1] : vector<2x128xf32> to vector<2xf32>
    %64 = vector.shape_cast %63 : vector<2xf32> to vector<2x1xf32>
    %65 = tpu.reciprocal %64 {approx = true} : vector<2x1xf32> -> vector<2x1xf32>
    %66 = vector.broadcast %65 : vector<2x1xf32> to vector<2x128xf32>
    %67 = arith.mulf %62, %66 : vector<2x128xf32>
    %c4_37 = arith.constant 4 : index
    %c0_38 = arith.constant 0 : index
    %68 = vector.load %arg9[%c4_37, %c0_38] : memref<16x128xf32, #tpu.memory_space<vmem>>, vector<2x128xf32>
    tpu.vector_store %arg9[%c4_37, %c0_38], %67 {strides = array<i32>} : memref<16x128xf32, #tpu.memory_space<vmem>>, vector<2x128xf32>,
    %69 = vector.extract_strided_slice %23 {offsets = [0, 384], sizes = [2, 128], strides = [1, 1]} : vector<2x1024xf32> to vector<2x128xf32>
    %c6 = arith.constant 6 : index
    %c0_39 = arith.constant 0 : index
    %70 = vector.load %arg3[%c6, %c0_39] : memref<16x128xf32, #tpu.memory_space<vmem>>, vector<2x128xf32>
    %71 = arith.addf %69, %70 : vector<2x128xf32>
    %c6_40 = arith.constant 6 : index
    %c0_41 = arith.constant 0 : index
    %72 = vector.load %arg10[%c6_40, %c0_41] : memref<16x128xf32, #tpu.memory_space<vmem>>, vector<2x128xf32>
    tpu.vector_store %arg10[%c6_40, %c0_41], %71 {strides = array<i32>} : memref<16x128xf32, #tpu.memory_space<vmem>>, vector<2x128xf32>,
    %cst_42 = arith.constant dense<0xFF800000> : vector<2xf32>
    %73 = vector.multi_reduction <maximumf>, %71, %cst_42 [1] : vector<2x128xf32> to vector<2xf32>
    %74 = vector.shape_cast %73 : vector<2xf32> to vector<2x1xf32>
    %75 = vector.broadcast %74 : vector<2x1xf32> to vector<2x128xf32>
    %76 = arith.subf %71, %75 : vector<2x128xf32>
    %77 = math.exp %76 : vector<2x128xf32>
    %cst_43 = arith.constant dense<0.000000e+00> : vector<2xf32>
    %78 = vector.multi_reduction <add>, %77, %cst_43 [1] : vector<2x128xf32> to vector<2xf32>
    %79 = vector.shape_cast %78 : vector<2xf32> to vector<2x1xf32>
    %80 = tpu.reciprocal %79 {approx = true} : vector<2x1xf32> -> vector<2x1xf32>
    %81 = vector.broadcast %80 : vector<2x1xf32> to vector<2x128xf32>
    %82 = arith.mulf %77, %81 : vector<2x128xf32>
    %c6_44 = arith.constant 6 : index
    %c0_45 = arith.constant 0 : index
    %83 = vector.load %arg9[%c6_44, %c0_45] : memref<16x128xf32, #tpu.memory_space<vmem>>, vector<2x128xf32>
    tpu.vector_store %arg9[%c6_44, %c0_45], %82 {strides = array<i32>} : memref<16x128xf32, #tpu.memory_space<vmem>>, vector<2x128xf32>,
    %84 = vector.extract_strided_slice %23 {offsets = [0, 512], sizes = [2, 128], strides = [1, 1]} : vector<2x1024xf32> to vector<2x128xf32>
    %c8 = arith.constant 8 : index
    %c0_46 = arith.constant 0 : index
    %85 = vector.load %arg3[%c8, %c0_46] : memref<16x128xf32, #tpu.memory_space<vmem>>, vector<2x128xf32>
    %86 = arith.addf %84, %85 : vector<2x128xf32>
    %c8_47 = arith.constant 8 : index
    %c0_48 = arith.constant 0 : index
    %87 = vector.load %arg10[%c8_47, %c0_48] : memref<16x128xf32, #tpu.memory_space<vmem>>, vector<2x128xf32>
    tpu.vector_store %arg10[%c8_47, %c0_48], %86 {strides = array<i32>} : memref<16x128xf32, #tpu.memory_space<vmem>>, vector<2x128xf32>,
    %cst_49 = arith.constant dense<0xFF800000> : vector<2xf32>
    %88 = vector.multi_reduction <maximumf>, %86, %cst_49 [1] : vector<2x128xf32> to vector<2xf32>
    %89 = vector.shape_cast %88 : vector<2xf32> to vector<2x1xf32>
    %90 = vector.broadcast %89 : vector<2x1xf32> to vector<2x128xf32>
    %91 = arith.subf %86, %90 : vector<2x128xf32>
    %92 = math.exp %91 : vector<2x128xf32>
    %cst_50 = arith.constant dense<0.000000e+00> : vector<2xf32>
    %93 = vector.multi_reduction <add>, %92, %cst_50 [1] : vector<2x128xf32> to vector<2xf32>
    %94 = vector.shape_cast %93 : vector<2xf32> to vector<2x1xf32>
    %95 = tpu.reciprocal %94 {approx = true} : vector<2x1xf32> -> vector<2x1xf32>
    %96 = vector.broadcast %95 : vector<2x1xf32> to vector<2x128xf32>
    %97 = arith.mulf %92, %96 : vector<2x128xf32>
    %c8_51 = arith.constant 8 : index
    %c0_52 = arith.constant 0 : index
    %98 = vector.load %arg9[%c8_51, %c0_52] : memref<16x128xf32, #tpu.memory_space<vmem>>, vector<2x128xf32>
    tpu.vector_store %arg9[%c8_51, %c0_52], %97 {strides = array<i32>} : memref<16x128xf32, #tpu.memory_space<vmem>>, vector<2x128xf32>,
    %99 = vector.extract_strided_slice %23 {offsets = [0, 640], sizes = [2, 128], strides = [1, 1]} : vector<2x1024xf32> to vector<2x128xf32>
    %c10 = arith.constant 10 : index
    %c0_53 = arith.constant 0 : index
    %100 = vector.load %arg3[%c10, %c0_53] : memref<16x128xf32, #tpu.memory_space<vmem>>, vector<2x128xf32>
    %101 = arith.addf %99, %100 : vector<2x128xf32>
    %c10_54 = arith.constant 10 : index
    %c0_55 = arith.constant 0 : index
    %102 = vector.load %arg10[%c10_54, %c0_55] : memref<16x128xf32, #tpu.memory_space<vmem>>, vector<2x128xf32>
    tpu.vector_store %arg10[%c10_54, %c0_55], %101 {strides = array<i32>} : memref<16x128xf32, #tpu.memory_space<vmem>>, vector<2x128xf32>,
    %cst_56 = arith.constant dense<0xFF800000> : vector<2xf32>
    %103 = vector.multi_reduction <maximumf>, %101, %cst_56 [1] : vector<2x128xf32> to vector<2xf32>
    %104 = vector.shape_cast %103 : vector<2xf32> to vector<2x1xf32>
    %105 = vector.broadcast %104 : vector<2x1xf32> to vector<2x128xf32>
    %106 = arith.subf %101, %105 : vector<2x128xf32>
    %107 = math.exp %106 : vector<2x128xf32>
    %cst_57 = arith.constant dense<0.000000e+00> : vector<2xf32>
    %108 = vector.multi_reduction <add>, %107, %cst_57 [1] : vector<2x128xf32> to vector<2xf32>
    %109 = vector.shape_cast %108 : vector<2xf32> to vector<2x1xf32>
    %110 = tpu.reciprocal %109 {approx = true} : vector<2x1xf32> -> vector<2x1xf32>
    %111 = vector.broadcast %110 : vector<2x1xf32> to vector<2x128xf32>
    %112 = arith.mulf %107, %111 : vector<2x128xf32>
    %c10_58 = arith.constant 10 : index
    %c0_59 = arith.constant 0 : index
    %113 = vector.load %arg9[%c10_58, %c0_59] : memref<16x128xf32, #tpu.memory_space<vmem>>, vector<2x128xf32>
    tpu.vector_store %arg9[%c10_58, %c0_59], %112 {strides = array<i32>} : memref<16x128xf32, #tpu.memory_space<vmem>>, vector<2x128xf32>,
    %114 = vector.extract_strided_slice %23 {offsets = [0, 768], sizes = [2, 128], strides = [1, 1]} : vector<2x1024xf32> to vector<2x128xf32>
    %c12 = arith.constant 12 : index
    %c0_60 = arith.constant 0 : index
    %115 = vector.load %arg3[%c12, %c0_60] : memref<16x128xf32, #tpu.memory_space<vmem>>, vector<2x128xf32>
    %116 = arith.addf %114, %115 : vector<2x128xf32>
    %c12_61 = arith.constant 12 : index
    %c0_62 = arith.constant 0 : index
    %117 = vector.load %arg10[%c12_61, %c0_62] : memref<16x128xf32, #tpu.memory_space<vmem>>, vector<2x128xf32>
    tpu.vector_store %arg10[%c12_61, %c0_62], %116 {strides = array<i32>} : memref<16x128xf32, #tpu.memory_space<vmem>>, vector<2x128xf32>,
    %cst_63 = arith.constant dense<0xFF800000> : vector<2xf32>
    %118 = vector.multi_reduction <maximumf>, %116, %cst_63 [1] : vector<2x128xf32> to vector<2xf32>
    %119 = vector.shape_cast %118 : vector<2xf32> to vector<2x1xf32>
    %120 = vector.broadcast %119 : vector<2x1xf32> to vector<2x128xf32>
    %121 = arith.subf %116, %120 : vector<2x128xf32>
    %122 = math.exp %121 : vector<2x128xf32>
    %cst_64 = arith.constant dense<0.000000e+00> : vector<2xf32>
    %123 = vector.multi_reduction <add>, %122, %cst_64 [1] : vector<2x128xf32> to vector<2xf32>
    %124 = vector.shape_cast %123 : vector<2xf32> to vector<2x1xf32>
    %125 = tpu.reciprocal %124 {approx = true} : vector<2x1xf32> -> vector<2x1xf32>
    %126 = vector.broadcast %125 : vector<2x1xf32> to vector<2x128xf32>
    %127 = arith.mulf %122, %126 : vector<2x128xf32>
    %c12_65 = arith.constant 12 : index
    %c0_66 = arith.constant 0 : index
    %128 = vector.load %arg9[%c12_65, %c0_66] : memref<16x128xf32, #tpu.memory_space<vmem>>, vector<2x128xf32>
    tpu.vector_store %arg9[%c12_65, %c0_66], %127 {strides = array<i32>} : memref<16x128xf32, #tpu.memory_space<vmem>>, vector<2x128xf32>,
    %129 = vector.extract_strided_slice %23 {offsets = [0, 896], sizes = [2, 128], strides = [1, 1]} : vector<2x1024xf32> to vector<2x128xf32>
    %c14 = arith.constant 14 : index
    %c0_67 = arith.constant 0 : index
    %130 = vector.load %arg3[%c14, %c0_67] : memref<16x128xf32, #tpu.memory_space<vmem>>, vector<2x128xf32>
    %131 = arith.addf %129, %130 : vector<2x128xf32>
    %c14_68 = arith.constant 14 : index
    %c0_69 = arith.constant 0 : index
    %132 = vector.load %arg10[%c14_68, %c0_69] : memref<16x128xf32, #tpu.memory_space<vmem>>, vector<2x128xf32>
    tpu.vector_store %arg10[%c14_68, %c0_69], %131 {strides = array<i32>} : memref<16x128xf32, #tpu.memory_space<vmem>>, vector<2x128xf32>,
    %cst_70 = arith.constant dense<0xFF800000> : vector<2xf32>
    %133 = vector.multi_reduction <maximumf>, %131, %cst_70 [1] : vector<2x128xf32> to vector<2xf32>
    %134 = vector.shape_cast %133 : vector<2xf32> to vector<2x1xf32>
    %135 = vector.broadcast %134 : vector<2x1xf32> to vector<2x128xf32>
    %136 = arith.subf %131, %135 : vector<2x128xf32>
    %137 = math.exp %136 : vector<2x128xf32>
    %cst_71 = arith.constant dense<0.000000e+00> : vector<2xf32>
    %138 = vector.multi_reduction <add>, %137, %cst_71 [1] : vector<2x128xf32> to vector<2xf32>
    %139 = vector.shape_cast %138 : vector<2xf32> to vector<2x1xf32>
    %140 = tpu.reciprocal %139 {approx = true} : vector<2x1xf32> -> vector<2x1xf32>
    %141 = vector.broadcast %140 : vector<2x1xf32> to vector<2x128xf32>
    %142 = arith.mulf %137, %141 : vector<2x128xf32>
    %c14_72 = arith.constant 14 : index
    %c0_73 = arith.constant 0 : index
    %143 = vector.load %arg9[%c14_72, %c0_73] : memref<16x128xf32, #tpu.memory_space<vmem>>, vector<2x128xf32>
    tpu.vector_store %arg9[%c14_72, %c0_73], %142 {strides = array<i32>} : memref<16x128xf32, #tpu.memory_space<vmem>>, vector<2x128xf32>,
    return
  }
  func.func @transform_0(%arg0: i32) -> (i32, i32) {
    %c0_i32 = arith.constant 0 : i32
    %c0_i32_0 = arith.constant 0 : i32
    return %arg0, %c0_i32 : i32, i32
  }
  func.func @transform_1(%arg0: i32) -> (i32, i32) {
    %c0_i32 = arith.constant 0 : i32
    %c0_i32_0 = arith.constant 0 : i32
    return %arg0, %c0_i32 : i32, i32
  }
  func.func @transform_2(%arg0: i32) -> (i32, i32) {
    %c0_i32 = arith.constant 0 : i32
    %c0_i32_0 = arith.constant 0 : i32
    return %arg0, %c0_i32 : i32, i32
  }
  func.func @transform_3(%arg0: i32) -> (i32, i32) {
    %c0_i32 = arith.constant 0 : i32
    %c0_i32_0 = arith.constant 0 : i32
    %c0_i32_1 = arith.constant 0 : i32
    return %c0_i32, %c0_i32_0 : i32, i32
  }
  func.func @transform_4(%arg0: i32) -> (i32, i32) {
    %c0_i32 = arith.constant 0 : i32
    %c0_i32_0 = arith.constant 0 : i32
    %c0_i32_1 = arith.constant 0 : i32
    return %c0_i32, %c0_i32_0 : i32, i32
  }
  func.func @transform_5(%arg0: i32) -> (i32, i32) {
    %c0_i32 = arith.constant 0 : i32
    %c0_i32_0 = arith.constant 0 : i32
    %c0_i32_1 = arith.constant 0 : i32
    return %c0_i32, %c0_i32_0 : i32, i32
  }
  func.func @transform_6(%arg0: i32) -> (i32, i32) {
    %c0_i32 = arith.constant 0 : i32
    %c0_i32_0 = arith.constant 0 : i32
    %c0_i32_1 = arith.constant 0 : i32
    return %c0_i32, %c0_i32_0 : i32, i32
  }
  func.func @transform_7(%arg0: i32) -> (i32, i32) {
    %c0_i32 = arith.constant 0 : i32
    %c0_i32_0 = arith.constant 0 : i32
    %c0_i32_1 = arith.constant 0 : i32
    return %c0_i32, %c0_i32_0 : i32, i32
  }
  func.func @transform_8(%arg0: i32) -> (i32, i32) {
    %c0_i32 = arith.constant 0 : i32
    %c0_i32_0 = arith.constant 0 : i32
    return %arg0, %c0_i32 : i32, i32
  }
  func.func @transform_9(%arg0: i32) -> (i32, i32) {
    %c0_i32 = arith.constant 0 : i32
    %c0_i32_0 = arith.constant 0 : i32
    return %arg0, %c0_i32 : i32, i32
  }
}

</mosaic_0001>

<llo_original>
// kernel: tpu_custom_call.1
$region0: #{tpu_custom_call.1}
  #allocation0 [shape = 'u32[]', space=smem, size = 0x4, offset = 0x4, fixed_abs, tag = 'smem constant byte address 0x4 - core index']
  #allocation1 [shape = 'u32[144,128]{1,0:T(1,128)}', space=vmem, size = 0x12000, scoped, tag = 'internal scratch']
  %s0 = inlined_call_operand.vmem [shape: f32[128,32], index: 0, kind: input, shape index: {}]
  %s1 = inlined_call_operand.vmem [shape: f32[64,24], index: 1, kind: input, shape index: {}]
  %s2 = inlined_call_operand.vmem [shape: f32[16,128], index: 2, kind: input, shape index: {}]
  %s3 = inlined_call_operand.vmem [shape: f32[32,48], index: 3, kind: input, shape index: {}]
  %s4 = inlined_call_operand.vmem [shape: f32[1,48], index: 4, kind: input, shape index: {}]
  %s5 = inlined_call_operand.vmem [shape: f32[24,48], index: 5, kind: input, shape index: {}]
  %s6 = inlined_call_operand.vmem [shape: f32[1,48], index: 6, kind: input, shape index: {}]
  %s7 = inlined_call_operand.vmem [shape: f32[2,48], index: 7, kind: input, shape index: {}]
  %s8 = inlined_call_operand.hbm [shape: f32[16,128], index: 8, kind: output, shape index: {0}]
  %s9 = inlined_call_operand.hbm [shape: f32[16,128], index: 9, kind: output, shape index: {1}]
  %10 = xla_tuple %s8, %s9
  %s11 = sld [smem:[#allocation0]]
  $region50: #{tpu_custom_call.1} parent=0
    _
  %s13 = ssub.s32 1, %s11
  %s14 = scalar_select 0, %s13, %s11
  $region1: #{tpu_custom_call.1} parent=0
    #allocation2 [shape = 'u8[8192]{0}', space=vmem, size = 0x2000, scoped, tag = 'output window, operand 0, single buffered']
    #allocation3 [shape = 's32[1]{0}', space=sflag, size = 0x4, scoped, tag = 'scoped memory for tpu_custom_call.1']
    #allocation4 [shape = 'u8[8192]{0}', space=vmem, size = 0x2000, scoped, tag = 'output window, operand 1, single buffered']
    #allocation5 [shape = 's32[1]{0}', space=sflag, size = 0x4, scoped, tag = 'scoped memory for tpu_custom_call.1']
    %15 = vsyncpa [#allocation3], 0
    %16 = vsyncpa [#allocation5], 0
    // Predicated region
    $region2: #{tpu_custom_call.1} parent=1 // pred_check
      _
    $region3: #{tpu_custom_call.1} parent=1 // pred_check_branch
      %18 = sbr.rel (0) target = $region5
    $region4: #{tpu_custom_call.1} parent=1 // pred_region
      _
    $region5: #{tpu_custom_call.1} parent=1 // pred_fallthru
      _
    // Predicated region
    $region6: #{tpu_custom_call.1} parent=1 // pred_check
      _
    $region7: #{tpu_custom_call.1} parent=1 // pred_check_branch
      %20 = sbr.rel (0) target = $region9
    $region8: #{tpu_custom_call.1} parent=1 // pred_region
      _
    $region9: #{tpu_custom_call.1} parent=1 // pred_fallthru
      _
    // Predicated region
    $region10: #{tpu_custom_call.1} parent=1 // pred_check
      _
    $region11: #{tpu_custom_call.1} parent=1 // pred_check_branch
      %22 = sbr.rel (0) target = $region13
    $region12: #{tpu_custom_call.1} parent=1 // pred_region
      _
    $region13: #{tpu_custom_call.1} parent=1 // pred_fallthru
      _
    // Predicated region
    $region14: #{tpu_custom_call.1} parent=1 // pred_check
      _
    $region15: #{tpu_custom_call.1} parent=1 // pred_check_branch
      %24 = sbr.rel (0) target = $region17
    $region16: #{tpu_custom_call.1} parent=1 // pred_region
      _
    $region17: #{tpu_custom_call.1} parent=1 // pred_fallthru
      _
    // Predicated region
    $region18: #{tpu_custom_call.1} parent=1 // pred_check
      _
    $region19: #{tpu_custom_call.1} parent=1 // pred_check_branch
      %26 = sbr.rel (0) target = $region21
    $region20: #{tpu_custom_call.1} parent=1 // pred_region
      _
    $region21: #{tpu_custom_call.1} parent=1 // pred_fallthru
      _
    // Predicated region
    $region22: #{tpu_custom_call.1} parent=1 // pred_check
      _
    $region23: #{tpu_custom_call.1} parent=1 // pred_check_branch
      %28 = sbr.rel (0) target = $region25
    $region24: #{tpu_custom_call.1} parent=1 // pred_region
      _
    $region25: #{tpu_custom_call.1} parent=1 // pred_fallthru
      _
    // Predicated region
    $region26: #{tpu_custom_call.1} parent=1 // pred_check
      _
    $region27: #{tpu_custom_call.1} parent=1 // pred_check_branch
      %30 = sbr.rel (0) target = $region29
    $region28: #{tpu_custom_call.1} parent=1 // pred_region
      _
    $region29: #{tpu_custom_call.1} parent=1 // pred_fallthru
      _
    // Predicated region
    $region30: #{tpu_custom_call.1} parent=1 // pred_check
      _
    $region31: #{tpu_custom_call.1} parent=1 // pred_check_branch
      %32 = sbr.rel (0) target = $region33
    $region32: #{tpu_custom_call.1} parent=1 // pred_region
      _
    $region33: #{tpu_custom_call.1} parent=1 // pred_fallthru
      _
    %v33 = vld [vmem:[%s0] sm:$0xff]
    %v34 = vld [vmem:[%s0 + $0x8] sm:$0xff]
    %v35 = vld [vmem:[%s0 + $0x10] sm:$0xff]
    %v36 = vld [vmem:[%s0 + $0x18] sm:$0xff]
    %v37 = vld [vmem:[%s0 + $0x20] sm:$0xff]
    %v38 = vld [vmem:[%s0 + $0x28] sm:$0xff]
    %v39 = vld [vmem:[%s0 + $0x30] sm:$0xff]
    %v40 = vld [vmem:[%s0 + $0x38] sm:$0xff]
    %v41 = vld [vmem:[%s0 + $0x40] sm:$0xff]
    %v42 = vld [vmem:[%s0 + $0x48] sm:$0xff]
    %v43 = vld [vmem:[%s0 + $0x50] sm:$0xff]
    %v44 = vld [vmem:[%s0 + $0x58] sm:$0xff]
    %v45 = vld [vmem:[%s0 + $0x60] sm:$0xff]
    %v46 = vld [vmem:[%s0 + $0x68] sm:$0xff]
    %v47 = vld [vmem:[%s0 + $0x70] sm:$0xff]
    %v48 = vld [vmem:[%s0 + $0x78] sm:$0xff]
    %v49 = vld [vmem:[%s3] sm:$0xff]
    %v50 = vld [vmem:[%s3 + $0x8] sm:$0xff]
    %v51 = vld [vmem:[%s3 + $0x10] sm:$0xff]
    %v52 = vld [vmem:[%s3 + $0x18] sm:$0xff]
    %v53 = vld [vmem:[%s4] sm:$0x1]
    %v55 = vlaneseq
    %v56 = vshrl.u32 %v55, 7
    %v57 = vsub.s32 0, %v56
    %v58 = vrot.slane %v53, %v57
    %vm60 = vcmask 261120
    %v62 = vsel %vm60, %v33, 0
    %v65 = vsel %vm60, %v34, 0
    %v68 = vsel %vm60, %v35, 0
    %v71 = vsel %vm60, %v36, 0
    %v74 = vsel %vm60, %v37, 0
    %v77 = vsel %vm60, %v38, 0
    %v80 = vsel %vm60, %v39, 0
    %v83 = vsel %vm60, %v40, 0
    %v86 = vsel %vm60, %v41, 0
    %v89 = vsel %vm60, %v42, 0
    %v92 = vsel %vm60, %v43, 0
    %v95 = vsel %vm60, %v44, 0
    %v98 = vsel %vm60, %v45, 0
    %v101 = vsel %vm60, %v46, 0
    %v104 = vsel %vm60, %v47, 0
    %v107 = vsel %vm60, %v48, 0
    %109 = vmatprep.subr.mxu0 0.0
    %110 = vmatpush1.msra.mxu0 %v49
    %111 = vmatprep.subr.mxu0 0.0
    %112 = vmatpush1.msra.mxu0 %v50
    %113 = vmatprep.subr.mxu0 0.0
    %114 = vmatpush1.msra.mxu0 %v51
    %115 = vmatprep.subr.mxu0 0.0
    %116 = vmatpush1.msra.mxu0 %v52
    %117 = vmatprep.subr.mxu0 0.0
    %118 = vmatpush1.msra.mxu0 0.0
    %119 = vmatprep.subr.mxu0 0.0
    %120 = vmatpush1.msra.mxu0 0.0
    %121 = vmatprep.subr.mxu0 0.0
    %122 = vmatpush1.msra.mxu0 0.0
    %123 = vmatprep.subr.mxu0 0.0
    %124 = vmatpush1.msra.mxu0 0.0
    %125 = vmatprep.subr.mxu0 0.0
    %126 = vmatpush1.msra.mxu0 0.0
    %127 = vmatprep.subr.mxu0 0.0
    %128 = vmatpush1.msra.mxu0 0.0
    %129 = vmatprep.subr.mxu0 0.0
    %130 = vmatpush1.msra.mxu0 0.0
    %131 = vmatprep.subr.mxu0 0.0
    %132 = vmatpush1.msra.mxu0 0.0
    %133 = vmatprep.subr.mxu0 0.0
    %134 = vmatpush1.msra.mxu0 0.0
    %135 = vmatprep.subr.mxu0 0.0
    %136 = vmatpush1.msra.mxu0 0.0
    %137 = vmatprep.subr.mxu0 0.0
    %138 = vmatpush1.msra.mxu0 0.0
    %139 = vmatprep.subr.mxu0 0.0
    %140 = vmatpush1.msra.mxu0 0.0
    %141 = vmatprep.subr.mxu0 0.0
    %142 = vmatpush1.msra.mxu0 0.0
    %143 = vmatprep.subr.mxu0 0.0
    %144 = vmatpush1.msra.mxu0 0.0
    %145 = vmatprep.subr.mxu0 0.0
    %146 = vmatpush1.msra.mxu0 0.0
    %147 = vmatprep.subr.mxu0 0.0
    %148 = vmatpush1.msra.mxu0 0.0
    %149 = vmatprep.subr.mxu0 0.0
    %150 = vmatpush1.msra.mxu0 0.0
    %151 = vmatprep.subr.mxu0 0.0
    %152 = vmatpush1.msra.mxu0 0.0
    %153 = vmatprep.subr.mxu0 0.0
    %154 = vmatpush1.msra.mxu0 0.0
    %155 = vmatprep.subr.mxu0 0.0
    %156 = vmatpush1.msra.mxu0 0.0
    %157 = vmatprep.subr.mxu0 0.0
    %158 = vmatpush1.msra.mxu0 0.0
    %159 = vmatprep.subr.mxu0 0.0
    %160 = vmatpush1.msra.mxu0 0.0
    %161 = vmatprep.subr.mxu0 0.0
    %162 = vmatpush1.msra.mxu0 0.0
    %163 = vmatprep.subr.mxu0 0.0
    %164 = vmatpush1.msra.mxu0 0.0
    %165 = vmatprep.subr.mxu0 0.0
    %166 = vmatpush1.msra.mxu0 0.0
    %167 = vmatprep.subr.mxu0 0.0
    %168 = vmatpush1.msra.mxu0 0.0
    %169 = vmatprep.subr.mxu0 0.0
    %170 = vmatpush1.msra.mxu0 0.0
    %171 = vmatprep.subr.mxu0 0.0
    %172 = vmatpush1.msra.mxu0 0.0
    %173 = vmatprep.mubr.f32.mxu0 0.0
    %174 = vmatmul.mubr.f32.gmra.mrb[0].mxu0 %v62
    %v175 = vpop.f32.mrb[0].mxu0
    %v176 = vadd.f32 %v58, %v175
    %v177 = vpop.f32.mrb[0].mxu0
    %178 = vmatprep.mubr.f32.mxu0 0.0
    %179 = vmatmul.mubr.f32.gmra.mrb[0].mxu0 %v65
    %v180 = vpop.f32.mrb[0].mxu0
    %v181 = vadd.f32 %v58, %v180
    %v182 = vpop.f32.mrb[0].mxu0
    %183 = vmatprep.mubr.f32.mxu0 0.0
    %184 = vmatmul.mubr.f32.gmra.mrb[0].mxu0 %v68
    %v185 = vpop.f32.mrb[0].mxu0
    %v186 = vadd.f32 %v58, %v185
    %v187 = vpop.f32.mrb[0].mxu0
    %188 = vmatprep.mubr.f32.mxu0 0.0
    %189 = vmatmul.mubr.f32.gmra.mrb[0].mxu0 %v71
    %v190 = vpop.f32.mrb[0].mxu0
    %v191 = vadd.f32 %v58, %v190
    %v192 = vpop.f32.mrb[0].mxu0
    %193 = vmatprep.mubr.f32.mxu0 0.0
    %194 = vmatmul.mubr.f32.gmra.mrb[0].mxu0 %v74
    %v195 = vpop.f32.mrb[0].mxu0
    %v196 = vadd.f32 %v58, %v195
    %v197 = vpop.f32.mrb[0].mxu0
    %198 = vmatprep.mubr.f32.mxu0 0.0
    %199 = vmatmul.mubr.f32.gmra.mrb[0].mxu0 %v77
    %v200 = vpop.f32.mrb[0].mxu0
    %v201 = vadd.f32 %v58, %v200
    %v202 = vpop.f32.mrb[0].mxu0
    %203 = vmatprep.mubr.f32.mxu0 0.0
    %204 = vmatmul.mubr.f32.gmra.mrb[0].mxu0 %v80
    %v205 = vpop.f32.mrb[0].mxu0
    %v206 = vadd.f32 %v58, %v205
    %v207 = vpop.f32.mrb[0].mxu0
    %208 = vmatprep.mubr.f32.mxu0 0.0
    %209 = vmatmul.mubr.f32.gmra.mrb[0].mxu0 %v83
    %v210 = vpop.f32.mrb[0].mxu0
    %v211 = vadd.f32 %v58, %v210
    %v212 = vpop.f32.mrb[0].mxu0
    %213 = vmatprep.mubr.f32.mxu0 0.0
    %214 = vmatmul.mubr.f32.gmra.mrb[0].mxu0 %v86
    %v215 = vpop.f32.mrb[0].mxu0
    %v216 = vadd.f32 %v58, %v215
    %v217 = vpop.f32.mrb[0].mxu0
    %218 = vmatprep.mubr.f32.mxu0 0.0
    %219 = vmatmul.mubr.f32.gmra.mrb[0].mxu0 %v89
    %v220 = vpop.f32.mrb[0].mxu0
    %v221 = vadd.f32 %v58, %v220
    %v222 = vpop.f32.mrb[0].mxu0
    %223 = vmatprep.mubr.f32.mxu0 0.0
    %224 = vmatmul.mubr.f32.gmra.mrb[0].mxu0 %v92
    %v225 = vpop.f32.mrb[0].mxu0
    %v226 = vadd.f32 %v58, %v225
    %v227 = vpop.f32.mrb[0].mxu0
    %228 = vmatprep.mubr.f32.mxu0 0.0
    %229 = vmatmul.mubr.f32.gmra.mrb[0].mxu0 %v95
    %v230 = vpop.f32.mrb[0].mxu0
    %v231 = vadd.f32 %v58, %v230
    %v232 = vpop.f32.mrb[0].mxu0
    %233 = vmatprep.mubr.f32.mxu0 0.0
    %234 = vmatmul.mubr.f32.gmra.mrb[0].mxu0 %v98
    %v235 = vpop.f32.mrb[0].mxu0
    %v236 = vadd.f32 %v58, %v235
    %v237 = vpop.f32.mrb[0].mxu0
    %238 = vmatprep.mubr.f32.mxu0 0.0
    %239 = vmatmul.mubr.f32.gmra.mrb[0].mxu0 %v101
    %v240 = vpop.f32.mrb[0].mxu0
    %v241 = vadd.f32 %v58, %v240
    %v242 = vpop.f32.mrb[0].mxu0
    %243 = vmatprep.mubr.f32.mxu0 0.0
    %244 = vmatmul.mubr.f32.gmra.mrb[0].mxu0 %v104
    %v245 = vpop.f32.mrb[0].mxu0
    %v246 = vadd.f32 %v58, %v245
    %v247 = vpop.f32.mrb[0].mxu0
    %248 = vmatprep.mubr.f32.mxu0 0.0
    %249 = vmatmul.mubr.f32.gmra.mrb[0].mxu0 %v107
    %v250 = vpop.f32.mrb[0].mxu0
    %v251 = vadd.f32 %v58, %v250
    %v252 = vpop.f32.mrb[0].mxu0
    %253 = vdwg.mxu0
    %v254 = vmax.f32 %v176, 0.0
    %v255 = vmax.f32 %v181, 0.0
    %v256 = vmax.f32 %v186, 0.0
    %v257 = vmax.f32 %v191, 0.0
    %v258 = vmax.f32 %v196, 0.0
    %v259 = vmax.f32 %v201, 0.0
    %v260 = vmax.f32 %v206, 0.0
    %v261 = vmax.f32 %v211, 0.0
    %v262 = vmax.f32 %v216, 0.0
    %v263 = vmax.f32 %v221, 0.0
    %v264 = vmax.f32 %v226, 0.0
    %v265 = vmax.f32 %v231, 0.0
    %v266 = vmax.f32 %v236, 0.0
    %v267 = vmax.f32 %v241, 0.0
    %v268 = vmax.f32 %v246, 0.0
    %v269 = vmax.f32 %v251, 0.0
    %v270 = vld [vmem:[%s1] sm:$0xff]
    %v271 = vld [vmem:[%s1 + $0x8] sm:$0xff]
    %v272 = vld [vmem:[%s1 + $0x10] sm:$0xff]
    %v273 = vld [vmem:[%s1 + $0x18] sm:$0xff]
    %v274 = vld [vmem:[%s1 + $0x20] sm:$0xff]
    %v275 = vld [vmem:[%s1 + $0x28] sm:$0xff]
    %v276 = vld [vmem:[%s1 + $0x30] sm:$0xff]
    %v277 = vld [vmem:[%s1 + $0x38] sm:$0xff]
    %v278 = vld [vmem:[%s5] sm:$0xff]
    %v279 = vld [vmem:[%s5 + $0x8] sm:$0xff]
    %v280 = vld [vmem:[%s5 + $0x10] sm:$0xff]
    %v281 = vld [vmem:[%s6] sm:$0x1]
    %v283 = vlaneseq
    %v284 = vshrl.u32 %v283, 7
    %v285 = vsub.s32 0, %v284
    %v286 = vrot.slane %v281, %v285
    %vm288 = vcmask 195584
    %v290 = vsel %vm288, %v270, 0
    %v293 = vsel %vm288, %v271, 0
    %v296 = vsel %vm288, %v272, 0
    %v299 = vsel %vm288, %v273, 0
    %v302 = vsel %vm288, %v274, 0
    %v305 = vsel %vm288, %v275, 0
    %v308 = vsel %vm288, %v276, 0
    %v311 = vsel %vm288, %v277, 0
    %313 = vmatprep.subr.mxu0 0.0
    %314 = vmatpush1.msra.mxu0 %v278
    %315 = vmatprep.subr.mxu0 0.0
    %316 = vmatpush1.msra.mxu0 %v279
    %317 = vmatprep.subr.mxu0 0.0
    %318 = vmatpush1.msra.mxu0 %v280
    %319 = vmatprep.subr.mxu0 0.0
    %320 = vmatpush1.msra.mxu0 0.0
    %321 = vmatprep.subr.mxu0 0.0
    %322 = vmatpush1.msra.mxu0 0.0
    %323 = vmatprep.subr.mxu0 0.0
    %324 = vmatpush1.msra.mxu0 0.0
    %325 = vmatprep.subr.mxu0 0.0
    %326 = vmatpush1.msra.mxu0 0.0
    %327 = vmatprep.subr.mxu0 0.0
    %328 = vmatpush1.msra.mxu0 0.0
    %329 = vmatprep.subr.mxu0 0.0
    %330 = vmatpush1.msra.mxu0 0.0
    %331 = vmatprep.subr.mxu0 0.0
    %332 = vmatpush1.msra.mxu0 0.0
    %333 = vmatprep.subr.mxu0 0.0
    %334 = vmatpush1.msra.mxu0 0.0
    %335 = vmatprep.subr.mxu0 0.0
    %336 = vmatpush1.msra.mxu0 0.0
    %337 = vmatprep.subr.mxu0 0.0
    %338 = vmatpush1.msra.mxu0 0.0
    %339 = vmatprep.subr.mxu0 0.0
    %340 = vmatpush1.msra.mxu0 0.0
    %341 = vmatprep.subr.mxu0 0.0
    %342 = vmatpush1.msra.mxu0 0.0
    %343 = vmatprep.subr.mxu0 0.0
    %344 = vmatpush1.msra.mxu0 0.0
    %345 = vmatprep.subr.mxu0 0.0
    %346 = vmatpush1.msra.mxu0 0.0
    %347 = vmatprep.subr.mxu0 0.0
    %348 = vmatpush1.msra.mxu0 0.0
    %349 = vmatprep.subr.mxu0 0.0
    %350 = vmatpush1.msra.mxu0 0.0
    %351 = vmatprep.subr.mxu0 0.0
    %352 = vmatpush1.msra.mxu0 0.0
    %353 = vmatprep.subr.mxu0 0.0
    %354 = vmatpush1.msra.mxu0 0.0
    %355 = vmatprep.subr.mxu0 0.0
    %356 = vmatpush1.msra.mxu0 0.0
    %357 = vmatprep.subr.mxu0 0.0
    %358 = vmatpush1.msra.mxu0 0.0
    %359 = vmatprep.subr.mxu0 0.0
    %360 = vmatpush1.msra.mxu0 0.0
    %361 = vmatprep.subr.mxu0 0.0
    %362 = vmatpush1.msra.mxu0 0.0
    %363 = vmatprep.subr.mxu0 0.0
    %364 = vmatpush1.msra.mxu0 0.0
    %365 = vmatprep.subr.mxu0 0.0
    %366 = vmatpush1.msra.mxu0 0.0
    %367 = vmatprep.subr.mxu0 0.0
    %368 = vmatpush1.msra.mxu0 0.0
    %369 = vmatprep.subr.mxu0 0.0
    %370 = vmatpush1.msra.mxu0 0.0
    %371 = vmatprep.subr.mxu0 0.0
    %372 = vmatpush1.msra.mxu0 0.0
    %373 = vmatprep.subr.mxu0 0.0
    %374 = vmatpush1.msra.mxu0 0.0
    %375 = vmatprep.subr.mxu0 0.0
    %376 = vmatpush1.msra.mxu0 0.0
    %377 = vmatprep.mubr.f32.mxu0 0.0
    %378 = vmatmul.mubr.f32.gmra.mrb[0].mxu0 %v290
    %v379 = vpop.f32.mrb[0].mxu0
    %v380 = vadd.f32 %v286, %v379
    %v381 = vpop.f32.mrb[0].mxu0
    %382 = vmatprep.mubr.f32.mxu0 0.0
    %383 = vmatmul.mubr.f32.gmra.mrb[0].mxu0 %v293
    %v384 = vpop.f32.mrb[0].mxu0
    %v385 = vadd.f32 %v286, %v384
    %v386 = vpop.f32.mrb[0].mxu0
    %387 = vmatprep.mubr.f32.mxu0 0.0
    %388 = vmatmul.mubr.f32.gmra.mrb[0].mxu0 %v296
    %v389 = vpop.f32.mrb[0].mxu0
    %v390 = vadd.f32 %v286, %v389
    %v391 = vpop.f32.mrb[0].mxu0
    %392 = vmatprep.mubr.f32.mxu0 0.0
    %393 = vmatmul.mubr.f32.gmra.mrb[0].mxu0 %v299
    %v394 = vpop.f32.mrb[0].mxu0
    %v395 = vadd.f32 %v286, %v394
    %v396 = vpop.f32.mrb[0].mxu0
    %397 = vmatprep.mubr.f32.mxu0 0.0
    %398 = vmatmul.mubr.f32.gmra.mrb[0].mxu0 %v302
    %v399 = vpop.f32.mrb[0].mxu0
    %v400 = vadd.f32 %v286, %v399
    %v401 = vpop.f32.mrb[0].mxu0
    %402 = vmatprep.mubr.f32.mxu0 0.0
    %403 = vmatmul.mubr.f32.gmra.mrb[0].mxu0 %v305
    %v404 = vpop.f32.mrb[0].mxu0
    %v405 = vadd.f32 %v286, %v404
    %v406 = vpop.f32.mrb[0].mxu0
    %407 = vmatprep.mubr.f32.mxu0 0.0
    %408 = vmatmul.mubr.f32.gmra.mrb[0].mxu0 %v308
    %v409 = vpop.f32.mrb[0].mxu0
    %v410 = vadd.f32 %v286, %v409
    %v411 = vpop.f32.mrb[0].mxu0
    %412 = vmatprep.mubr.f32.mxu0 0.0
    %413 = vmatmul.mubr.f32.gmra.mrb[0].mxu0 %v311
    %v414 = vpop.f32.mrb[0].mxu0
    %v415 = vadd.f32 %v286, %v414
    %v416 = vpop.f32.mrb[0].mxu0
    %417 = vdwg.mxu0
    %v418 = vmax.f32 %v380, 0.0
    %v419 = vmax.f32 %v385, 0.0
    %v420 = vmax.f32 %v390, 0.0
    %v421 = vmax.f32 %v395, 0.0
    %v422 = vmax.f32 %v400, 0.0
    %v423 = vmax.f32 %v405, 0.0
    %v424 = vmax.f32 %v410, 0.0
    %v425 = vmax.f32 %v415, 0.0
    %v442 = vcombine.high %v254, %v254
    %v444 = vunpack.c.l.s4 1966171168
    %v445 = vunpack.c.0.s8 %v444
    %v446 = vlaneseq
    %v447 = vshrl.u32 %v446, 7
    %v448 = vsub.s32 %v445, %v447
    %v449 = vrot.slane %v254, %v448
    %v451 = vunpack.c.l.s4 1966171168
    %v452 = vunpack.c.0.s8 %v451
    %v453 = vlaneseq
    %v454 = vshrl.u32 %v453, 7
    %v455 = vsub.s32 %v452, %v454
    %v456 = vrot.slane %v442, %v455
    %v457 = vcombine.high %v449, %v449
    %v458 = vcombine.high %v456, %v456
    %v460 = vunpack.c.l.s4 1966171168
    %v461 = vunpack.c.0.s8 %v460
    %v462 = vlaneseq
    %v463 = vshrl.u32 %v462, 7
    %v464 = vsub.s32 %v461, %v463
    %v465 = vrot.slane %v449, %v464
    %v467 = vunpack.c.l.s4 1966171168
    %v468 = vunpack.c.0.s8 %v467
    %v469 = vlaneseq
    %v470 = vshrl.u32 %v469, 7
    %v471 = vsub.s32 %v468, %v470
    %v472 = vrot.slane %v456, %v471
    %v474 = vunpack.c.l.s4 1966171168
    %v475 = vunpack.c.0.s8 %v474
    %v476 = vlaneseq
    %v477 = vshrl.u32 %v476, 7
    %v478 = vsub.s32 %v475, %v477
    %v479 = vrot.slane %v457, %v478
    %v481 = vunpack.c.l.s4 1966171168
    %v482 = vunpack.c.0.s8 %v481
    %v483 = vlaneseq
    %v484 = vshrl.u32 %v483, 7
    %v485 = vsub.s32 %v482, %v484
    %v486 = vrot.slane %v458, %v485
    %v487 = vcombine.high %v465, %v465
    %v488 = vcombine.high %v472, %v472
    %v489 = vcombine.high %v479, %v479
    %v490 = vcombine.high %v486, %v486
    %v491 = vcombine.high %v255, %v255
    %v493 = vunpack.c.l.s4 1966171168
    %v494 = vunpack.c.0.s8 %v493
    %v495 = vlaneseq
    %v496 = vshrl.u32 %v495, 7
    %v497 = vsub.s32 %v494, %v496
    %v498 = vrot.slane %v255, %v497
    %v500 = vunpack.c.l.s4 1966171168
    %v501 = vunpack.c.0.s8 %v500
    %v502 = vlaneseq
    %v503 = vshrl.u32 %v502, 7
    %v504 = vsub.s32 %v501, %v503
    %v505 = vrot.slane %v491, %v504
    %v506 = vcombine.high %v498, %v498
    %v507 = vcombine.high %v505, %v505
    %v509 = vunpack.c.l.s4 1966171168
    %v510 = vunpack.c.0.s8 %v509
    %v511 = vlaneseq
    %v512 = vshrl.u32 %v511, 7
    %v513 = vsub.s32 %v510, %v512
    %v514 = vrot.slane %v498, %v513
    %v516 = vunpack.c.l.s4 1966171168
    %v517 = vunpack.c.0.s8 %v516
    %v518 = vlaneseq
    %v519 = vshrl.u32 %v518, 7
    %v520 = vsub.s32 %v517, %v519
    %v521 = vrot.slane %v505, %v520
    %v523 = vunpack.c.l.s4 1966171168
    %v524 = vunpack.c.0.s8 %v523
    %v525 = vlaneseq
    %v526 = vshrl.u32 %v525, 7
    %v527 = vsub.s32 %v524, %v526
    %v528 = vrot.slane %v506, %v527
    %v530 = vunpack.c.l.s4 1966171168
    %v531 = vunpack.c.0.s8 %v530
    %v532 = vlaneseq
    %v533 = vshrl.u32 %v532, 7
    %v534 = vsub.s32 %v531, %v533
    %v535 = vrot.slane %v507, %v534
    %v536 = vcombine.high %v514, %v514
    %v537 = vcombine.high %v521, %v521
    %v538 = vcombine.high %v528, %v528
    %v539 = vcombine.high %v535, %v535
    %v540 = vcombine.high %v256, %v256
    %v542 = vunpack.c.l.s4 1966171168
    %v543 = vunpack.c.0.s8 %v542
    %v544 = vlaneseq
    %v545 = vshrl.u32 %v544, 7
    %v546 = vsub.s32 %v543, %v545
    %v547 = vrot.slane %v256, %v546
    %v549 = vunpack.c.l.s4 1966171168
    %v550 = vunpack.c.0.s8 %v549
    %v551 = vlaneseq
    %v552 = vshrl.u32 %v551, 7
    %v553 = vsub.s32 %v550, %v552
    %v554 = vrot.slane %v540, %v553
    %v555 = vcombine.high %v547, %v547
    %v556 = vcombine.high %v554, %v554
    %v558 = vunpack.c.l.s4 1966171168
    %v559 = vunpack.c.0.s8 %v558
    %v560 = vlaneseq
    %v561 = vshrl.u32 %v560, 7
    %v562 = vsub.s32 %v559, %v561
    %v563 = vrot.slane %v547, %v562
    %v565 = vunpack.c.l.s4 1966171168
    %v566 = vunpack.c.0.s8 %v565
    %v567 = vlaneseq
    %v568 = vshrl.u32 %v567, 7
    %v569 = vsub.s32 %v566, %v568
    %v570 = vrot.slane %v554, %v569
    %v572 = vunpack.c.l.s4 1966171168
    %v573 = vunpack.c.0.s8 %v572
    %v574 = vlaneseq
    %v575 = vshrl.u32 %v574, 7
    %v576 = vsub.s32 %v573, %v575
    %v577 = vrot.slane %v555, %v576
    %v579 = vunpack.c.l.s4 1966171168
    %v580 = vunpack.c.0.s8 %v579
    %v581 = vlaneseq
    %v582 = vshrl.u32 %v581, 7
    %v583 = vsub.s32 %v580, %v582
    %v584 = vrot.slane %v556, %v583
    %v585 = vcombine.high %v563, %v563
    %v586 = vcombine.high %v570, %v570
    %v587 = vcombine.high %v577, %v577
    %v588 = vcombine.high %v584, %v584
    %v589 = vcombine.high %v257, %v257
    %v591 = vunpack.c.l.s4 1966171168
    %v592 = vunpack.c.0.s8 %v591
    %v593 = vlaneseq
    %v594 = vshrl.u32 %v593, 7
    %v595 = vsub.s32 %v592, %v594
    %v596 = vrot.slane %v257, %v595
    %v598 = vunpack.c.l.s4 1966171168
    %v599 = vunpack.c.0.s8 %v598
    %v600 = vlaneseq
    %v601 = vshrl.u32 %v600, 7
    %v602 = vsub.s32 %v599, %v601
    %v603 = vrot.slane %v589, %v602
    %v604 = vcombine.high %v596, %v596
    %v605 = vcombine.high %v603, %v603
    %v607 = vunpack.c.l.s4 1966171168
    %v608 = vunpack.c.0.s8 %v607
    %v609 = vlaneseq
    %v610 = vshrl.u32 %v609, 7
    %v611 = vsub.s32 %v608, %v610
    %v612 = vrot.slane %v596, %v611
    %v614 = vunpack.c.l.s4 1966171168
    %v615 = vunpack.c.0.s8 %v614
    %v616 = vlaneseq
    %v617 = vshrl.u32 %v616, 7
    %v618 = vsub.s32 %v615, %v617
    %v619 = vrot.slane %v603, %v618
    %v621 = vunpack.c.l.s4 1966171168
    %v622 = vunpack.c.0.s8 %v621
    %v623 = vlaneseq
    %v624 = vshrl.u32 %v623, 7
    %v625 = vsub.s32 %v622, %v624
    %v626 = vrot.slane %v604, %v625
    %v628 = vunpack.c.l.s4 1966171168
    %v629 = vunpack.c.0.s8 %v628
    %v630 = vlaneseq
    %v631 = vshrl.u32 %v630, 7
    %v632 = vsub.s32 %v629, %v631
    %v633 = vrot.slane %v605, %v632
    %v634 = vcombine.high %v612, %v612
    %v635 = vcombine.high %v619, %v619
    %v636 = vcombine.high %v626, %v626
    %v637 = vcombine.high %v633, %v633
    %v638 = vcombine.high %v258, %v258
    %v640 = vunpack.c.l.s4 1966171168
    %v641 = vunpack.c.0.s8 %v640
    %v642 = vlaneseq
    %v643 = vshrl.u32 %v642, 7
    %v644 = vsub.s32 %v641, %v643
    %v645 = vrot.slane %v258, %v644
    %v647 = vunpack.c.l.s4 1966171168
    %v648 = vunpack.c.0.s8 %v647
    %v649 = vlaneseq
    %v650 = vshrl.u32 %v649, 7
    %v651 = vsub.s32 %v648, %v650
    %v652 = vrot.slane %v638, %v651
    %v653 = vcombine.high %v645, %v645
    %v654 = vcombine.high %v652, %v652
    %v656 = vunpack.c.l.s4 1966171168
    %v657 = vunpack.c.0.s8 %v656
    %v658 = vlaneseq
    %v659 = vshrl.u32 %v658, 7
    %v660 = vsub.s32 %v657, %v659
    %v661 = vrot.slane %v645, %v660
    %v663 = vunpack.c.l.s4 1966171168
    %v664 = vunpack.c.0.s8 %v663
    %v665 = vlaneseq
    %v666 = vshrl.u32 %v665, 7
    %v667 = vsub.s32 %v664, %v666
    %v668 = vrot.slane %v652, %v667
    %v670 = vunpack.c.l.s4 1966171168
    %v671 = vunpack.c.0.s8 %v670
    %v672 = vlaneseq
    %v673 = vshrl.u32 %v672, 7
    %v674 = vsub.s32 %v671, %v673
    %v675 = vrot.slane %v653, %v674
    %v677 = vunpack.c.l.s4 1966171168
    %v678 = vunpack.c.0.s8 %v677
    %v679 = vlaneseq
    %v680 = vshrl.u32 %v679, 7
    %v681 = vsub.s32 %v678, %v680
    %v682 = vrot.slane %v654, %v681
    %v683 = vcombine.high %v661, %v661
    %v684 = vcombine.high %v668, %v668
    %v685 = vcombine.high %v675, %v675
    %v686 = vcombine.high %v682, %v682
    %v687 = vcombine.high %v259, %v259
    %v689 = vunpack.c.l.s4 1966171168
    %v690 = vunpack.c.0.s8 %v689
    %v691 = vlaneseq
    %v692 = vshrl.u32 %v691, 7
    %v693 = vsub.s32 %v690, %v692
    %v694 = vrot.slane %v259, %v693
    %v696 = vunpack.c.l.s4 1966171168
    %v697 = vunpack.c.0.s8 %v696
    %v698 = vlaneseq
    %v699 = vshrl.u32 %v698, 7
    %v700 = vsub.s32 %v697, %v699
    %v701 = vrot.slane %v687, %v700
    %v702 = vcombine.high %v694, %v694
    %v703 = vcombine.high %v701, %v701
    %v705 = vunpack.c.l.s4 1966171168
    %v706 = vunpack.c.0.s8 %v705
    %v707 = vlaneseq
    %v708 = vshrl.u32 %v707, 7
    %v709 = vsub.s32 %v706, %v708
    %v710 = vrot.slane %v694, %v709
    %v712 = vunpack.c.l.s4 1966171168
    %v713 = vunpack.c.0.s8 %v712
    %v714 = vlaneseq
    %v715 = vshrl.u32 %v714, 7
    %v716 = vsub.s32 %v713, %v715
    %v717 = vrot.slane %v701, %v716
    %v719 = vunpack.c.l.s4 1966171168
    %v720 = vunpack.c.0.s8 %v719
    %v721 = vlaneseq
    %v722 = vshrl.u32 %v721, 7
    %v723 = vsub.s32 %v720, %v722
    %v724 = vrot.slane %v702, %v723
    %v726 = vunpack.c.l.s4 1966171168
    %v727 = vunpack.c.0.s8 %v726
    %v728 = vlaneseq
    %v729 = vshrl.u32 %v728, 7
    %v730 = vsub.s32 %v727, %v729
    %v731 = vrot.slane %v703, %v730
    %v732 = vcombine.high %v710, %v710
    %v733 = vcombine.high %v717, %v717
    %v734 = vcombine.high %v724, %v724
    %v735 = vcombine.high %v731, %v731
    %v736 = vcombine.high %v260, %v260
    %v738 = vunpack.c.l.s4 1966171168
    %v739 = vunpack.c.0.s8 %v738
    %v740 = vlaneseq
    %v741 = vshrl.u32 %v740, 7
    %v742 = vsub.s32 %v739, %v741
    %v743 = vrot.slane %v260, %v742
    %v745 = vunpack.c.l.s4 1966171168
    %v746 = vunpack.c.0.s8 %v745
    %v747 = vlaneseq
    %v748 = vshrl.u32 %v747, 7
    %v749 = vsub.s32 %v746, %v748
    %v750 = vrot.slane %v736, %v749
    %v751 = vcombine.high %v743, %v743
    %v752 = vcombine.high %v750, %v750
    %v754 = vunpack.c.l.s4 1966171168
    %v755 = vunpack.c.0.s8 %v754
    %v756 = vlaneseq
    %v757 = vshrl.u32 %v756, 7
    %v758 = vsub.s32 %v755, %v757
    %v759 = vrot.slane %v743, %v758
    %v761 = vunpack.c.l.s4 1966171168
    %v762 = vunpack.c.0.s8 %v761
    %v763 = vlaneseq
    %v764 = vshrl.u32 %v763, 7
    %v765 = vsub.s32 %v762, %v764
    %v766 = vrot.slane %v750, %v765
    %v768 = vunpack.c.l.s4 1966171168
    %v769 = vunpack.c.0.s8 %v768
    %v770 = vlaneseq
    %v771 = vshrl.u32 %v770, 7
    %v772 = vsub.s32 %v769, %v771
    %v773 = vrot.slane %v751, %v772
    %v775 = vunpack.c.l.s4 1966171168
    %v776 = vunpack.c.0.s8 %v775
    %v777 = vlaneseq
    %v778 = vshrl.u32 %v777, 7
    %v779 = vsub.s32 %v776, %v778
    %v780 = vrot.slane %v752, %v779
    %v781 = vcombine.high %v759, %v759
    %v782 = vcombine.high %v766, %v766
    %v783 = vcombine.high %v773, %v773
    %v784 = vcombine.high %v780, %v780
    %v785 = vcombine.high %v261, %v261
    %v787 = vunpack.c.l.s4 1966171168
    %v788 = vunpack.c.0.s8 %v787
    %v789 = vlaneseq
    %v790 = vshrl.u32 %v789, 7
    %v791 = vsub.s32 %v788, %v790
    %v792 = vrot.slane %v261, %v791
    %v794 = vunpack.c.l.s4 1966171168
    %v795 = vunpack.c.0.s8 %v794
    %v796 = vlaneseq
    %v797 = vshrl.u32 %v796, 7
    %v798 = vsub.s32 %v795, %v797
    %v799 = vrot.slane %v785, %v798
    %v800 = vcombine.high %v792, %v792
    %v801 = vcombine.high %v799, %v799
    %v803 = vunpack.c.l.s4 1966171168
    %v804 = vunpack.c.0.s8 %v803
    %v805 = vlaneseq
    %v806 = vshrl.u32 %v805, 7
    %v807 = vsub.s32 %v804, %v806
    %v808 = vrot.slane %v792, %v807
    %v810 = vunpack.c.l.s4 1966171168
    %v811 = vunpack.c.0.s8 %v810
    %v812 = vlaneseq
    %v813 = vshrl.u32 %v812, 7
    %v814 = vsub.s32 %v811, %v813
    %v815 = vrot.slane %v799, %v814
    %v817 = vunpack.c.l.s4 1966171168
    %v818 = vunpack.c.0.s8 %v817
    %v819 = vlaneseq
    %v820 = vshrl.u32 %v819, 7
    %v821 = vsub.s32 %v818, %v820
    %v822 = vrot.slane %v800, %v821
    %v824 = vunpack.c.l.s4 1966171168
    %v825 = vunpack.c.0.s8 %v824
    %v826 = vlaneseq
    %v827 = vshrl.u32 %v826, 7
    %v828 = vsub.s32 %v825, %v827
    %v829 = vrot.slane %v801, %v828
    %v830 = vcombine.high %v808, %v808
    %v831 = vcombine.high %v815, %v815
    %v832 = vcombine.high %v822, %v822
    %v833 = vcombine.high %v829, %v829
    %v834 = vcombine.high %v262, %v262
    %v836 = vunpack.c.l.s4 1966171168
    %v837 = vunpack.c.0.s8 %v836
    %v838 = vlaneseq
    %v839 = vshrl.u32 %v838, 7
    %v840 = vsub.s32 %v837, %v839
    %v841 = vrot.slane %v262, %v840
    %v843 = vunpack.c.l.s4 1966171168
    %v844 = vunpack.c.0.s8 %v843
    %v845 = vlaneseq
    %v846 = vshrl.u32 %v845, 7
    %v847 = vsub.s32 %v844, %v846
    %v848 = vrot.slane %v834, %v847
    %v849 = vcombine.high %v841, %v841
    %v850 = vcombine.high %v848, %v848
    %v852 = vunpack.c.l.s4 1966171168
    %v853 = vunpack.c.0.s8 %v852
    %v854 = vlaneseq
    %v855 = vshrl.u32 %v854, 7
    %v856 = vsub.s32 %v853, %v855
    %v857 = vrot.slane %v841, %v856
    %v859 = vunpack.c.l.s4 1966171168
    %v860 = vunpack.c.0.s8 %v859
    %v861 = vlaneseq
    %v862 = vshrl.u32 %v861, 7
    %v863 = vsub.s32 %v860, %v862
    %v864 = vrot.slane %v848, %v863
    %v866 = vunpack.c.l.s4 1966171168
    %v867 = vunpack.c.0.s8 %v866
    %v868 = vlaneseq
    %v869 = vshrl.u32 %v868, 7
    %v870 = vsub.s32 %v867, %v869
    %v871 = vrot.slane %v849, %v870
    %v873 = vunpack.c.l.s4 1966171168
    %v874 = vunpack.c.0.s8 %v873
    %v875 = vlaneseq
    %v876 = vshrl.u32 %v875, 7
    %v877 = vsub.s32 %v874, %v876
    %v878 = vrot.slane %v850, %v877
    %v879 = vcombine.high %v857, %v857
    %v880 = vcombine.high %v864, %v864
    %v881 = vcombine.high %v871, %v871
    %v882 = vcombine.high %v878, %v878
    %v883 = vcombine.high %v263, %v263
    %v885 = vunpack.c.l.s4 1966171168
    %v886 = vunpack.c.0.s8 %v885
    %v887 = vlaneseq
    %v888 = vshrl.u32 %v887, 7
    %v889 = vsub.s32 %v886, %v888
    %v890 = vrot.slane %v263, %v889
    %v892 = vunpack.c.l.s4 1966171168
    %v893 = vunpack.c.0.s8 %v892
    %v894 = vlaneseq
    %v895 = vshrl.u32 %v894, 7
    %v896 = vsub.s32 %v893, %v895
    %v897 = vrot.slane %v883, %v896
    %v898 = vcombine.high %v890, %v890
    %v899 = vcombine.high %v897, %v897
    %v901 = vunpack.c.l.s4 1966171168
    %v902 = vunpack.c.0.s8 %v901
    %v903 = vlaneseq
    %v904 = vshrl.u32 %v903, 7
    %v905 = vsub.s32 %v902, %v904
    %v906 = vrot.slane %v890, %v905
    %v908 = vunpack.c.l.s4 1966171168
    %v909 = vunpack.c.0.s8 %v908
    %v910 = vlaneseq
    %v911 = vshrl.u32 %v910, 7
    %v912 = vsub.s32 %v909, %v911
    %v913 = vrot.slane %v897, %v912
    %v915 = vunpack.c.l.s4 1966171168
    %v916 = vunpack.c.0.s8 %v915
    %v917 = vlaneseq
    %v918 = vshrl.u32 %v917, 7
    %v919 = vsub.s32 %v916, %v918
    %v920 = vrot.slane %v898, %v919
    %v922 = vunpack.c.l.s4 1966171168
    %v923 = vunpack.c.0.s8 %v922
    %v924 = vlaneseq
    %v925 = vshrl.u32 %v924, 7
    %v926 = vsub.s32 %v923, %v925
    %v927 = vrot.slane %v899, %v926
    %v928 = vcombine.high %v906, %v906
    %v929 = vcombine.high %v913, %v913
    %v930 = vcombine.high %v920, %v920
    %v931 = vcombine.high %v927, %v927
    %v932 = vcombine.high %v264, %v264
    %v934 = vunpack.c.l.s4 1966171168
    %v935 = vunpack.c.0.s8 %v934
    %v936 = vlaneseq
    %v937 = vshrl.u32 %v936, 7
    %v938 = vsub.s32 %v935, %v937
    %v939 = vrot.slane %v264, %v938
    %v941 = vunpack.c.l.s4 1966171168
    %v942 = vunpack.c.0.s8 %v941
    %v943 = vlaneseq
    %v944 = vshrl.u32 %v943, 7
    %v945 = vsub.s32 %v942, %v944
    %v946 = vrot.slane %v932, %v945
    %v947 = vcombine.high %v939, %v939
    %v948 = vcombine.high %v946, %v946
    %v950 = vunpack.c.l.s4 1966171168
    %v951 = vunpack.c.0.s8 %v950
    %v952 = vlaneseq
    %v953 = vshrl.u32 %v952, 7
    %v954 = vsub.s32 %v951, %v953
    %v955 = vrot.slane %v939, %v954
    %v957 = vunpack.c.l.s4 1966171168
    %v958 = vunpack.c.0.s8 %v957
    %v959 = vlaneseq
    %v960 = vshrl.u32 %v959, 7
    %v961 = vsub.s32 %v958, %v960
    %v962 = vrot.slane %v946, %v961
    %v964 = vunpack.c.l.s4 1966171168
    %v965 = vunpack.c.0.s8 %v964
    %v966 = vlaneseq
    %v967 = vshrl.u32 %v966, 7
    %v968 = vsub.s32 %v965, %v967
    %v969 = vrot.slane %v947, %v968
    %v971 = vunpack.c.l.s4 1966171168
    %v972 = vunpack.c.0.s8 %v971
    %v973 = vlaneseq
    %v974 = vshrl.u32 %v973, 7
    %v975 = vsub.s32 %v972, %v974
    %v976 = vrot.slane %v948, %v975
    %v977 = vcombine.high %v955, %v955
    %v978 = vcombine.high %v962, %v962
    %v979 = vcombine.high %v969, %v969
    %v980 = vcombine.high %v976, %v976
    %v981 = vcombine.high %v265, %v265
    %v983 = vunpack.c.l.s4 1966171168
    %v984 = vunpack.c.0.s8 %v983
    %v985 = vlaneseq
    %v986 = vshrl.u32 %v985, 7
    %v987 = vsub.s32 %v984, %v986
    %v988 = vrot.slane %v265, %v987
    %v990 = vunpack.c.l.s4 1966171168
    %v991 = vunpack.c.0.s8 %v990
    %v992 = vlaneseq
    %v993 = vshrl.u32 %v992, 7
    %v994 = vsub.s32 %v991, %v993
    %v995 = vrot.slane %v981, %v994
    %v996 = vcombine.high %v988, %v988
    %v997 = vcombine.high %v995, %v995
    %v999 = vunpack.c.l.s4 1966171168
    %v1000 = vunpack.c.0.s8 %v999
    %v1001 = vlaneseq
    %v1002 = vshrl.u32 %v1001, 7
    %v1003 = vsub.s32 %v1000, %v1002
    %v1004 = vrot.slane %v988, %v1003
    %v1006 = vunpack.c.l.s4 1966171168
    %v1007 = vunpack.c.0.s8 %v1006
    %v1008 = vlaneseq
    %v1009 = vshrl.u32 %v1008, 7
    %v1010 = vsub.s32 %v1007, %v1009
    %v1011 = vrot.slane %v995, %v1010
    %v1013 = vunpack.c.l.s4 1966171168
    %v1014 = vunpack.c.0.s8 %v1013
    %v1015 = vlaneseq
    %v1016 = vshrl.u32 %v1015, 7
    %v1017 = vsub.s32 %v1014, %v1016
    %v1018 = vrot.slane %v996, %v1017
    %v1020 = vunpack.c.l.s4 1966171168
    %v1021 = vunpack.c.0.s8 %v1020
    %v1022 = vlaneseq
    %v1023 = vshrl.u32 %v1022, 7
    %v1024 = vsub.s32 %v1021, %v1023
    %v1025 = vrot.slane %v997, %v1024
    %v1026 = vcombine.high %v1004, %v1004
    %v1027 = vcombine.high %v1011, %v1011
    %v1028 = vcombine.high %v1018, %v1018
    %v1029 = vcombine.high %v1025, %v1025
    %v1030 = vcombine.high %v266, %v266
    %v1032 = vunpack.c.l.s4 1966171168
    %v1033 = vunpack.c.0.s8 %v1032
    %v1034 = vlaneseq
    %v1035 = vshrl.u32 %v1034, 7
    %v1036 = vsub.s32 %v1033, %v1035
    %v1037 = vrot.slane %v266, %v1036
    %v1039 = vunpack.c.l.s4 1966171168
    %v1040 = vunpack.c.0.s8 %v1039
    %v1041 = vlaneseq
    %v1042 = vshrl.u32 %v1041, 7
    %v1043 = vsub.s32 %v1040, %v1042
    %v1044 = vrot.slane %v1030, %v1043
    %v1045 = vcombine.high %v1037, %v1037
    %v1046 = vcombine.high %v1044, %v1044
    %v1048 = vunpack.c.l.s4 1966171168
    %v1049 = vunpack.c.0.s8 %v1048
    %v1050 = vlaneseq
    %v1051 = vshrl.u32 %v1050, 7
    %v1052 = vsub.s32 %v1049, %v1051
    %v1053 = vrot.slane %v1037, %v1052
    %v1055 = vunpack.c.l.s4 1966171168
    %v1056 = vunpack.c.0.s8 %v1055
    %v1057 = vlaneseq
    %v1058 = vshrl.u32 %v1057, 7
    %v1059 = vsub.s32 %v1056, %v1058
    %v1060 = vrot.slane %v1044, %v1059
    %v1062 = vunpack.c.l.s4 1966171168
    %v1063 = vunpack.c.0.s8 %v1062
    %v1064 = vlaneseq
    %v1065 = vshrl.u32 %v1064, 7
    %v1066 = vsub.s32 %v1063, %v1065
    %v1067 = vrot.slane %v1045, %v1066
    %v1069 = vunpack.c.l.s4 1966171168
    %v1070 = vunpack.c.0.s8 %v1069
    %v1071 = vlaneseq
    %v1072 = vshrl.u32 %v1071, 7
    %v1073 = vsub.s32 %v1070, %v1072
    %v1074 = vrot.slane %v1046, %v1073
    %v1075 = vcombine.high %v1053, %v1053
    %v1076 = vcombine.high %v1060, %v1060
    %v1077 = vcombine.high %v1067, %v1067
    %v1078 = vcombine.high %v1074, %v1074
    %v1079 = vcombine.high %v267, %v267
    %v1081 = vunpack.c.l.s4 1966171168
    %v1082 = vunpack.c.0.s8 %v1081
    %v1083 = vlaneseq
    %v1084 = vshrl.u32 %v1083, 7
    %v1085 = vsub.s32 %v1082, %v1084
    %v1086 = vrot.slane %v267, %v1085
    %v1088 = vunpack.c.l.s4 1966171168
    %v1089 = vunpack.c.0.s8 %v1088
    %v1090 = vlaneseq
    %v1091 = vshrl.u32 %v1090, 7
    %v1092 = vsub.s32 %v1089, %v1091
    %v1093 = vrot.slane %v1079, %v1092
    %v1094 = vcombine.high %v1086, %v1086
    %v1095 = vcombine.high %v1093, %v1093
    %v1097 = vunpack.c.l.s4 1966171168
    %v1098 = vunpack.c.0.s8 %v1097
    %v1099 = vlaneseq
    %v1100 = vshrl.u32 %v1099, 7
    %v1101 = vsub.s32 %v1098, %v1100
    %v1102 = vrot.slane %v1086, %v1101
    %v1104 = vunpack.c.l.s4 1966171168
    %v1105 = vunpack.c.0.s8 %v1104
    %v1106 = vlaneseq
    %v1107 = vshrl.u32 %v1106, 7
    %v1108 = vsub.s32 %v1105, %v1107
    %v1109 = vrot.slane %v1093, %v1108
    %v1111 = vunpack.c.l.s4 1966171168
    %v1112 = vunpack.c.0.s8 %v1111
    %v1113 = vlaneseq
    %v1114 = vshrl.u32 %v1113, 7
    %v1115 = vsub.s32 %v1112, %v1114
    %v1116 = vrot.slane %v1094, %v1115
    %v1118 = vunpack.c.l.s4 1966171168
    %v1119 = vunpack.c.0.s8 %v1118
    %v1120 = vlaneseq
    %v1121 = vshrl.u32 %v1120, 7
    %v1122 = vsub.s32 %v1119, %v1121
    %v1123 = vrot.slane %v1095, %v1122
    %v1124 = vcombine.high %v1102, %v1102
    %v1125 = vcombine.high %v1109, %v1109
    %v1126 = vcombine.high %v1116, %v1116
    %v1127 = vcombine.high %v1123, %v1123
    %v1128 = vcombine.high %v268, %v268
    %v1130 = vunpack.c.l.s4 1966171168
    %v1131 = vunpack.c.0.s8 %v1130
    %v1132 = vlaneseq
    %v1133 = vshrl.u32 %v1132, 7
    %v1134 = vsub.s32 %v1131, %v1133
    %v1135 = vrot.slane %v268, %v1134
    %v1137 = vunpack.c.l.s4 1966171168
    %v1138 = vunpack.c.0.s8 %v1137
    %v1139 = vlaneseq
    %v1140 = vshrl.u32 %v1139, 7
    %v1141 = vsub.s32 %v1138, %v1140
    %v1142 = vrot.slane %v1128, %v1141
    %v1143 = vcombine.high %v1135, %v1135
    %v1144 = vcombine.high %v1142, %v1142
    %v1146 = vunpack.c.l.s4 1966171168
    %v1147 = vunpack.c.0.s8 %v1146
    %v1148 = vlaneseq
    %v1149 = vshrl.u32 %v1148, 7
    %v1150 = vsub.s32 %v1147, %v1149
    %v1151 = vrot.slane %v1135, %v1150
    %v1153 = vunpack.c.l.s4 1966171168
    %v1154 = vunpack.c.0.s8 %v1153
    %v1155 = vlaneseq
    %v1156 = vshrl.u32 %v1155, 7
    %v1157 = vsub.s32 %v1154, %v1156
    %v1158 = vrot.slane %v1142, %v1157
    %v1160 = vunpack.c.l.s4 1966171168
    %v1161 = vunpack.c.0.s8 %v1160
    %v1162 = vlaneseq
    %v1163 = vshrl.u32 %v1162, 7
    %v1164 = vsub.s32 %v1161, %v1163
    %v1165 = vrot.slane %v1143, %v1164
    %v1167 = vunpack.c.l.s4 1966171168
    %v1168 = vunpack.c.0.s8 %v1167
    %v1169 = vlaneseq
    %v1170 = vshrl.u32 %v1169, 7
    %v1171 = vsub.s32 %v1168, %v1170
    %v1172 = vrot.slane %v1144, %v1171
    %v1173 = vcombine.high %v1151, %v1151
    %v1174 = vcombine.high %v1158, %v1158
    %v1175 = vcombine.high %v1165, %v1165
    %v1176 = vcombine.high %v1172, %v1172
    %v1177 = vcombine.high %v269, %v269
    %v1179 = vunpack.c.l.s4 1966171168
    %v1180 = vunpack.c.0.s8 %v1179
    %v1181 = vlaneseq
    %v1182 = vshrl.u32 %v1181, 7
    %v1183 = vsub.s32 %v1180, %v1182
    %v1184 = vrot.slane %v269, %v1183
    %v1186 = vunpack.c.l.s4 1966171168
    %v1187 = vunpack.c.0.s8 %v1186
    %v1188 = vlaneseq
    %v1189 = vshrl.u32 %v1188, 7
    %v1190 = vsub.s32 %v1187, %v1189
    %v1191 = vrot.slane %v1177, %v1190
    %v1192 = vcombine.high %v1184, %v1184
    %v1193 = vcombine.high %v1191, %v1191
    %v1195 = vunpack.c.l.s4 1966171168
    %v1196 = vunpack.c.0.s8 %v1195
    %v1197 = vlaneseq
    %v1198 = vshrl.u32 %v1197, 7
    %v1199 = vsub.s32 %v1196, %v1198
    %v1200 = vrot.slane %v1184, %v1199
    %v1202 = vunpack.c.l.s4 1966171168
    %v1203 = vunpack.c.0.s8 %v1202
    %v1204 = vlaneseq
    %v1205 = vshrl.u32 %v1204, 7
    %v1206 = vsub.s32 %v1203, %v1205
    %v1207 = vrot.slane %v1191, %v1206
    %v1209 = vunpack.c.l.s4 1966171168
    %v1210 = vunpack.c.0.s8 %v1209
    %v1211 = vlaneseq
    %v1212 = vshrl.u32 %v1211, 7
    %v1213 = vsub.s32 %v1210, %v1212
    %v1214 = vrot.slane %v1192, %v1213
    %v1216 = vunpack.c.l.s4 1966171168
    %v1217 = vunpack.c.0.s8 %v1216
    %v1218 = vlaneseq
    %v1219 = vshrl.u32 %v1218, 7
    %v1220 = vsub.s32 %v1217, %v1219
    %v1221 = vrot.slane %v1193, %v1220
    %v1222 = vcombine.high %v1200, %v1200
    %v1223 = vcombine.high %v1207, %v1207
    %v1224 = vcombine.high %v1214, %v1214
    %v1225 = vcombine.high %v1221, %v1221
    %v1226 = vlaneseq
    %v1227 = vshrl.u32 %v1226, 7
    %v1228 = vsub.s32 0, %v1227
    %v1229 = vrot.slane %v465, %v1228
    %v1230 = vlaneseq
    %v1231 = vshrl.u32 %v1230, 7
    %v1232 = vsub.s32 0, %v1231
    %v1233 = vrot.slane %v479, %v1232
    %v1234 = vlaneseq
    %v1235 = vshrl.u32 %v1234, 7
    %v1236 = vsub.s32 0, %v1235
    %v1237 = vrot.slane %v487, %v1236
    %v1238 = vlaneseq
    %v1239 = vshrl.u32 %v1238, 7
    %v1240 = vsub.s32 0, %v1239
    %v1241 = vrot.slane %v489, %v1240
    %v1242 = vlaneseq
    %v1243 = vshrl.u32 %v1242, 7
    %v1244 = vsub.s32 0, %v1243
    %v1245 = vrot.slane %v472, %v1244
    %v1246 = vlaneseq
    %v1247 = vshrl.u32 %v1246, 7
    %v1248 = vsub.s32 0, %v1247
    %v1249 = vrot.slane %v486, %v1248
    %v1250 = vlaneseq
    %v1251 = vshrl.u32 %v1250, 7
    %v1252 = vsub.s32 0, %v1251
    %v1253 = vrot.slane %v488, %v1252
    %v1254 = vlaneseq
    %v1255 = vshrl.u32 %v1254, 7
    %v1256 = vsub.s32 0, %v1255
    %v1257 = vrot.slane %v490, %v1256
    %v1258 = vlaneseq
    %v1259 = vshrl.u32 %v1258, 7
    %v1260 = vsub.s32 0, %v1259
    %v1261 = vrot.slane %v514, %v1260
    %v1262 = vlaneseq
    %v1263 = vshrl.u32 %v1262, 7
    %v1264 = vsub.s32 0, %v1263
    %v1265 = vrot.slane %v528, %v1264
    %v1266 = vlaneseq
    %v1267 = vshrl.u32 %v1266, 7
    %v1268 = vsub.s32 0, %v1267
    %v1269 = vrot.slane %v536, %v1268
    %v1270 = vlaneseq
    %v1271 = vshrl.u32 %v1270, 7
    %v1272 = vsub.s32 0, %v1271
    %v1273 = vrot.slane %v538, %v1272
    %v1274 = vlaneseq
    %v1275 = vshrl.u32 %v1274, 7
    %v1276 = vsub.s32 0, %v1275
    %v1277 = vrot.slane %v521, %v1276
    %v1278 = vlaneseq
    %v1279 = vshrl.u32 %v1278, 7
    %v1280 = vsub.s32 0, %v1279
    %v1281 = vrot.slane %v535, %v1280
    %v1282 = vlaneseq
    %v1283 = vshrl.u32 %v1282, 7
    %v1284 = vsub.s32 0, %v1283
    %v1285 = vrot.slane %v537, %v1284
    %v1286 = vlaneseq
    %v1287 = vshrl.u32 %v1286, 7
    %v1288 = vsub.s32 0, %v1287
    %v1289 = vrot.slane %v539, %v1288
    %v1290 = vlaneseq
    %v1291 = vshrl.u32 %v1290, 7
    %v1292 = vsub.s32 0, %v1291
    %v1293 = vrot.slane %v563, %v1292
    %v1294 = vlaneseq
    %v1295 = vshrl.u32 %v1294, 7
    %v1296 = vsub.s32 0, %v1295
    %v1297 = vrot.slane %v577, %v1296
    %v1298 = vlaneseq
    %v1299 = vshrl.u32 %v1298, 7
    %v1300 = vsub.s32 0, %v1299
    %v1301 = vrot.slane %v585, %v1300
    %v1302 = vlaneseq
    %v1303 = vshrl.u32 %v1302, 7
    %v1304 = vsub.s32 0, %v1303
    %v1305 = vrot.slane %v587, %v1304
    %v1306 = vlaneseq
    %v1307 = vshrl.u32 %v1306, 7
    %v1308 = vsub.s32 0, %v1307
    %v1309 = vrot.slane %v570, %v1308
    %v1310 = vlaneseq
    %v1311 = vshrl.u32 %v1310, 7
    %v1312 = vsub.s32 0, %v1311
    %v1313 = vrot.slane %v584, %v1312
    %v1314 = vlaneseq
    %v1315 = vshrl.u32 %v1314, 7
    %v1316 = vsub.s32 0, %v1315
    %v1317 = vrot.slane %v586, %v1316
    %v1318 = vlaneseq
    %v1319 = vshrl.u32 %v1318, 7
    %v1320 = vsub.s32 0, %v1319
    %v1321 = vrot.slane %v588, %v1320
    %v1322 = vlaneseq
    %v1323 = vshrl.u32 %v1322, 7
    %v1324 = vsub.s32 0, %v1323
    %v1325 = vrot.slane %v612, %v1324
    %v1326 = vlaneseq
    %v1327 = vshrl.u32 %v1326, 7
    %v1328 = vsub.s32 0, %v1327
    %v1329 = vrot.slane %v626, %v1328
    %v1330 = vlaneseq
    %v1331 = vshrl.u32 %v1330, 7
    %v1332 = vsub.s32 0, %v1331
    %v1333 = vrot.slane %v634, %v1332
    %v1334 = vlaneseq
    %v1335 = vshrl.u32 %v1334, 7
    %v1336 = vsub.s32 0, %v1335
    %v1337 = vrot.slane %v636, %v1336
    %v1338 = vlaneseq
    %v1339 = vshrl.u32 %v1338, 7
    %v1340 = vsub.s32 0, %v1339
    %v1341 = vrot.slane %v619, %v1340
    %v1342 = vlaneseq
    %v1343 = vshrl.u32 %v1342, 7
    %v1344 = vsub.s32 0, %v1343
    %v1345 = vrot.slane %v633, %v1344
    %v1346 = vlaneseq
    %v1347 = vshrl.u32 %v1346, 7
    %v1348 = vsub.s32 0, %v1347
    %v1349 = vrot.slane %v635, %v1348
    %v1350 = vlaneseq
    %v1351 = vshrl.u32 %v1350, 7
    %v1352 = vsub.s32 0, %v1351
    %v1353 = vrot.slane %v637, %v1352
    %v1354 = vlaneseq
    %v1355 = vshrl.u32 %v1354, 7
    %v1356 = vsub.s32 0, %v1355
    %v1357 = vrot.slane %v661, %v1356
    %v1358 = vlaneseq
    %v1359 = vshrl.u32 %v1358, 7
    %v1360 = vsub.s32 0, %v1359
    %v1361 = vrot.slane %v675, %v1360
    %v1362 = vlaneseq
    %v1363 = vshrl.u32 %v1362, 7
    %v1364 = vsub.s32 0, %v1363
    %v1365 = vrot.slane %v683, %v1364
    %v1366 = vlaneseq
    %v1367 = vshrl.u32 %v1366, 7
    %v1368 = vsub.s32 0, %v1367
    %v1369 = vrot.slane %v685, %v1368
    %v1370 = vlaneseq
    %v1371 = vshrl.u32 %v1370, 7
    %v1372 = vsub.s32 0, %v1371
    %v1373 = vrot.slane %v668, %v1372
    %v1374 = vlaneseq
    %v1375 = vshrl.u32 %v1374, 7
    %v1376 = vsub.s32 0, %v1375
    %v1377 = vrot.slane %v682, %v1376
    %v1378 = vlaneseq
    %v1379 = vshrl.u32 %v1378, 7
    %v1380 = vsub.s32 0, %v1379
    %v1381 = vrot.slane %v684, %v1380
    %v1382 = vlaneseq
    %v1383 = vshrl.u32 %v1382, 7
    %v1384 = vsub.s32 0, %v1383
    %v1385 = vrot.slane %v686, %v1384
    %v1386 = vlaneseq
    %v1387 = vshrl.u32 %v1386, 7
    %v1388 = vsub.s32 0, %v1387
    %v1389 = vrot.slane %v710, %v1388
    %v1390 = vlaneseq
    %v1391 = vshrl.u32 %v1390, 7
    %v1392 = vsub.s32 0, %v1391
    %v1393 = vrot.slane %v724, %v1392
    %v1394 = vlaneseq
    %v1395 = vshrl.u32 %v1394, 7
    %v1396 = vsub.s32 0, %v1395
    %v1397 = vrot.slane %v732, %v1396
    %v1398 = vlaneseq
    %v1399 = vshrl.u32 %v1398, 7
    %v1400 = vsub.s32 0, %v1399
    %v1401 = vrot.slane %v734, %v1400
    %v1402 = vlaneseq
    %v1403 = vshrl.u32 %v1402, 7
    %v1404 = vsub.s32 0, %v1403
    %v1405 = vrot.slane %v717, %v1404
    %v1406 = vlaneseq
    %v1407 = vshrl.u32 %v1406, 7
    %v1408 = vsub.s32 0, %v1407
    %v1409 = vrot.slane %v731, %v1408
    %v1410 = vlaneseq
    %v1411 = vshrl.u32 %v1410, 7
    %v1412 = vsub.s32 0, %v1411
    %v1413 = vrot.slane %v733, %v1412
    %v1414 = vlaneseq
    %v1415 = vshrl.u32 %v1414, 7
    %v1416 = vsub.s32 0, %v1415
    %v1417 = vrot.slane %v735, %v1416
    %v1418 = vlaneseq
    %v1419 = vshrl.u32 %v1418, 7
    %v1420 = vsub.s32 0, %v1419
    %v1421 = vrot.slane %v759, %v1420
    %v1422 = vlaneseq
    %v1423 = vshrl.u32 %v1422, 7
    %v1424 = vsub.s32 0, %v1423
    %v1425 = vrot.slane %v773, %v1424
    %v1426 = vlaneseq
    %v1427 = vshrl.u32 %v1426, 7
    %v1428 = vsub.s32 0, %v1427
    %v1429 = vrot.slane %v781, %v1428
    %v1430 = vlaneseq
    %v1431 = vshrl.u32 %v1430, 7
    %v1432 = vsub.s32 0, %v1431
    %v1433 = vrot.slane %v783, %v1432
    %v1434 = vlaneseq
    %v1435 = vshrl.u32 %v1434, 7
    %v1436 = vsub.s32 0, %v1435
    %v1437 = vrot.slane %v766, %v1436
    %v1438 = vlaneseq
    %v1439 = vshrl.u32 %v1438, 7
    %v1440 = vsub.s32 0, %v1439
    %v1441 = vrot.slane %v780, %v1440
    %v1442 = vlaneseq
    %v1443 = vshrl.u32 %v1442, 7
    %v1444 = vsub.s32 0, %v1443
    %v1445 = vrot.slane %v782, %v1444
    %v1446 = vlaneseq
    %v1447 = vshrl.u32 %v1446, 7
    %v1448 = vsub.s32 0, %v1447
    %v1449 = vrot.slane %v784, %v1448
    %v1450 = vlaneseq
    %v1451 = vshrl.u32 %v1450, 7
    %v1452 = vsub.s32 0, %v1451
    %v1453 = vrot.slane %v808, %v1452
    %v1454 = vlaneseq
    %v1455 = vshrl.u32 %v1454, 7
    %v1456 = vsub.s32 0, %v1455
    %v1457 = vrot.slane %v822, %v1456
    %v1458 = vlaneseq
    %v1459 = vshrl.u32 %v1458, 7
    %v1460 = vsub.s32 0, %v1459
    %v1461 = vrot.slane %v830, %v1460
    %v1462 = vlaneseq
    %v1463 = vshrl.u32 %v1462, 7
    %v1464 = vsub.s32 0, %v1463
    %v1465 = vrot.slane %v832, %v1464
    %v1466 = vlaneseq
    %v1467 = vshrl.u32 %v1466, 7
    %v1468 = vsub.s32 0, %v1467
    %v1469 = vrot.slane %v815, %v1468
    %v1470 = vlaneseq
    %v1471 = vshrl.u32 %v1470, 7
    %v1472 = vsub.s32 0, %v1471
    %v1473 = vrot.slane %v829, %v1472
    %v1474 = vlaneseq
    %v1475 = vshrl.u32 %v1474, 7
    %v1476 = vsub.s32 0, %v1475
    %v1477 = vrot.slane %v831, %v1476
    %v1478 = vlaneseq
    %v1479 = vshrl.u32 %v1478, 7
    %v1480 = vsub.s32 0, %v1479
    %v1481 = vrot.slane %v833, %v1480
    %v1482 = vlaneseq
    %v1483 = vshrl.u32 %v1482, 7
    %v1484 = vsub.s32 0, %v1483
    %v1485 = vrot.slane %v857, %v1484
    %v1486 = vlaneseq
    %v1487 = vshrl.u32 %v1486, 7
    %v1488 = vsub.s32 0, %v1487
    %v1489 = vrot.slane %v871, %v1488
    %v1490 = vlaneseq
    %v1491 = vshrl.u32 %v1490, 7
    %v1492 = vsub.s32 0, %v1491
    %v1493 = vrot.slane %v879, %v1492
    %v1494 = vlaneseq
    %v1495 = vshrl.u32 %v1494, 7
    %v1496 = vsub.s32 0, %v1495
    %v1497 = vrot.slane %v881, %v1496
    %v1498 = vlaneseq
    %v1499 = vshrl.u32 %v1498, 7
    %v1500 = vsub.s32 0, %v1499
    %v1501 = vrot.slane %v864, %v1500
    %v1502 = vlaneseq
    %v1503 = vshrl.u32 %v1502, 7
    %v1504 = vsub.s32 0, %v1503
    %v1505 = vrot.slane %v878, %v1504
    %v1506 = vlaneseq
    %v1507 = vshrl.u32 %v1506, 7
    %v1508 = vsub.s32 0, %v1507
    %v1509 = vrot.slane %v880, %v1508
    %v1510 = vlaneseq
    %v1511 = vshrl.u32 %v1510, 7
    %v1512 = vsub.s32 0, %v1511
    %v1513 = vrot.slane %v882, %v1512
    %v1514 = vlaneseq
    %v1515 = vshrl.u32 %v1514, 7
    %v1516 = vsub.s32 0, %v1515
    %v1517 = vrot.slane %v906, %v1516
    %v1518 = vlaneseq
    %v1519 = vshrl.u32 %v1518, 7
    %v1520 = vsub.s32 0, %v1519
    %v1521 = vrot.slane %v920, %v1520
    %v1522 = vlaneseq
    %v1523 = vshrl.u32 %v1522, 7
    %v1524 = vsub.s32 0, %v1523
    %v1525 = vrot.slane %v928, %v1524
    %v1526 = vlaneseq
    %v1527 = vshrl.u32 %v1526, 7
    %v1528 = vsub.s32 0, %v1527
    %v1529 = vrot.slane %v930, %v1528
    %v1530 = vlaneseq
    %v1531 = vshrl.u32 %v1530, 7
    %v1532 = vsub.s32 0, %v1531
    %v1533 = vrot.slane %v913, %v1532
    %v1534 = vlaneseq
    %v1535 = vshrl.u32 %v1534, 7
    %v1536 = vsub.s32 0, %v1535
    %v1537 = vrot.slane %v927, %v1536
    %v1538 = vlaneseq
    %v1539 = vshrl.u32 %v1538, 7
    %v1540 = vsub.s32 0, %v1539
    %v1541 = vrot.slane %v929, %v1540
    %v1542 = vlaneseq
    %v1543 = vshrl.u32 %v1542, 7
    %v1544 = vsub.s32 0, %v1543
    %v1545 = vrot.slane %v931, %v1544
    %v1546 = vlaneseq
    %v1547 = vshrl.u32 %v1546, 7
    %v1548 = vsub.s32 0, %v1547
    %v1549 = vrot.slane %v955, %v1548
    %v1550 = vlaneseq
    %v1551 = vshrl.u32 %v1550, 7
    %v1552 = vsub.s32 0, %v1551
    %v1553 = vrot.slane %v969, %v1552
    %v1554 = vlaneseq
    %v1555 = vshrl.u32 %v1554, 7
    %v1556 = vsub.s32 0, %v1555
    %v1557 = vrot.slane %v977, %v1556
    %v1558 = vlaneseq
    %v1559 = vshrl.u32 %v1558, 7
    %v1560 = vsub.s32 0, %v1559
    %v1561 = vrot.slane %v979, %v1560
    %v1562 = vlaneseq
    %v1563 = vshrl.u32 %v1562, 7
    %v1564 = vsub.s32 0, %v1563
    %v1565 = vrot.slane %v962, %v1564
    %v1566 = vlaneseq
    %v1567 = vshrl.u32 %v1566, 7
    %v1568 = vsub.s32 0, %v1567
    %v1569 = vrot.slane %v976, %v1568
    %v1570 = vlaneseq
    %v1571 = vshrl.u32 %v1570, 7
    %v1572 = vsub.s32 0, %v1571
    %v1573 = vrot.slane %v978, %v1572
    %v1574 = vlaneseq
    %v1575 = vshrl.u32 %v1574, 7
    %v1576 = vsub.s32 0, %v1575
    %v1577 = vrot.slane %v980, %v1576
    %v1578 = vlaneseq
    %v1579 = vshrl.u32 %v1578, 7
    %v1580 = vsub.s32 0, %v1579
    %v1581 = vrot.slane %v1004, %v1580
    %v1582 = vlaneseq
    %v1583 = vshrl.u32 %v1582, 7
    %v1584 = vsub.s32 0, %v1583
    %v1585 = vrot.slane %v1018, %v1584
    %v1586 = vlaneseq
    %v1587 = vshrl.u32 %v1586, 7
    %v1588 = vsub.s32 0, %v1587
    %v1589 = vrot.slane %v1026, %v1588
    %v1590 = vlaneseq
    %v1591 = vshrl.u32 %v1590, 7
    %v1592 = vsub.s32 0, %v1591
    %v1593 = vrot.slane %v1028, %v1592
    %v1594 = vlaneseq
    %v1595 = vshrl.u32 %v1594, 7
    %v1596 = vsub.s32 0, %v1595
    %v1597 = vrot.slane %v1011, %v1596
    %v1598 = vlaneseq
    %v1599 = vshrl.u32 %v1598, 7
    %v1600 = vsub.s32 0, %v1599
    %v1601 = vrot.slane %v1025, %v1600
    %v1602 = vlaneseq
    %v1603 = vshrl.u32 %v1602, 7
    %v1604 = vsub.s32 0, %v1603
    %v1605 = vrot.slane %v1027, %v1604
    %v1606 = vlaneseq
    %v1607 = vshrl.u32 %v1606, 7
    %v1608 = vsub.s32 0, %v1607
    %v1609 = vrot.slane %v1029, %v1608
    %v1610 = vlaneseq
    %v1611 = vshrl.u32 %v1610, 7
    %v1612 = vsub.s32 0, %v1611
    %v1613 = vrot.slane %v1053, %v1612
    %v1614 = vlaneseq
    %v1615 = vshrl.u32 %v1614, 7
    %v1616 = vsub.s32 0, %v1615
    %v1617 = vrot.slane %v1067, %v1616
    %v1618 = vlaneseq
    %v1619 = vshrl.u32 %v1618, 7
    %v1620 = vsub.s32 0, %v1619
    %v1621 = vrot.slane %v1075, %v1620
    %v1622 = vlaneseq
    %v1623 = vshrl.u32 %v1622, 7
    %v1624 = vsub.s32 0, %v1623
    %v1625 = vrot.slane %v1077, %v1624
    %v1626 = vlaneseq
    %v1627 = vshrl.u32 %v1626, 7
    %v1628 = vsub.s32 0, %v1627
    %v1629 = vrot.slane %v1060, %v1628
    %v1630 = vlaneseq
    %v1631 = vshrl.u32 %v1630, 7
    %v1632 = vsub.s32 0, %v1631
    %v1633 = vrot.slane %v1074, %v1632
    %v1634 = vlaneseq
    %v1635 = vshrl.u32 %v1634, 7
    %v1636 = vsub.s32 0, %v1635
    %v1637 = vrot.slane %v1076, %v1636
    %v1638 = vlaneseq
    %v1639 = vshrl.u32 %v1638, 7
    %v1640 = vsub.s32 0, %v1639
    %v1641 = vrot.slane %v1078, %v1640
    %v1642 = vlaneseq
    %v1643 = vshrl.u32 %v1642, 7
    %v1644 = vsub.s32 0, %v1643
    %v1645 = vrot.slane %v1102, %v1644
    %v1646 = vlaneseq
    %v1647 = vshrl.u32 %v1646, 7
    %v1648 = vsub.s32 0, %v1647
    %v1649 = vrot.slane %v1116, %v1648
    %v1650 = vlaneseq
    %v1651 = vshrl.u32 %v1650, 7
    %v1652 = vsub.s32 0, %v1651
    %v1653 = vrot.slane %v1124, %v1652
    %v1654 = vlaneseq
    %v1655 = vshrl.u32 %v1654, 7
    %v1656 = vsub.s32 0, %v1655
    %v1657 = vrot.slane %v1126, %v1656
    %v1658 = vlaneseq
    %v1659 = vshrl.u32 %v1658, 7
    %v1660 = vsub.s32 0, %v1659
    %v1661 = vrot.slane %v1109, %v1660
    %v1662 = vlaneseq
    %v1663 = vshrl.u32 %v1662, 7
    %v1664 = vsub.s32 0, %v1663
    %v1665 = vrot.slane %v1123, %v1664
    %v1666 = vlaneseq
    %v1667 = vshrl.u32 %v1666, 7
    %v1668 = vsub.s32 0, %v1667
    %v1669 = vrot.slane %v1125, %v1668
    %v1670 = vlaneseq
    %v1671 = vshrl.u32 %v1670, 7
    %v1672 = vsub.s32 0, %v1671
    %v1673 = vrot.slane %v1127, %v1672
    %v1674 = vlaneseq
    %v1675 = vshrl.u32 %v1674, 7
    %v1676 = vsub.s32 0, %v1675
    %v1677 = vrot.slane %v1151, %v1676
    %v1678 = vlaneseq
    %v1679 = vshrl.u32 %v1678, 7
    %v1680 = vsub.s32 0, %v1679
    %v1681 = vrot.slane %v1165, %v1680
    %v1682 = vlaneseq
    %v1683 = vshrl.u32 %v1682, 7
    %v1684 = vsub.s32 0, %v1683
    %v1685 = vrot.slane %v1173, %v1684
    %v1686 = vlaneseq
    %v1687 = vshrl.u32 %v1686, 7
    %v1688 = vsub.s32 0, %v1687
    %v1689 = vrot.slane %v1175, %v1688
    %v1690 = vlaneseq
    %v1691 = vshrl.u32 %v1690, 7
    %v1692 = vsub.s32 0, %v1691
    %v1693 = vrot.slane %v1158, %v1692
    %v1694 = vlaneseq
    %v1695 = vshrl.u32 %v1694, 7
    %v1696 = vsub.s32 0, %v1695
    %v1697 = vrot.slane %v1172, %v1696
    %v1698 = vlaneseq
    %v1699 = vshrl.u32 %v1698, 7
    %v1700 = vsub.s32 0, %v1699
    %v1701 = vrot.slane %v1174, %v1700
    %v1702 = vlaneseq
    %v1703 = vshrl.u32 %v1702, 7
    %v1704 = vsub.s32 0, %v1703
    %v1705 = vrot.slane %v1176, %v1704
    %v1706 = vlaneseq
    %v1707 = vshrl.u32 %v1706, 7
    %v1708 = vsub.s32 0, %v1707
    %v1709 = vrot.slane %v1200, %v1708
    %v1710 = vlaneseq
    %v1711 = vshrl.u32 %v1710, 7
    %v1712 = vsub.s32 0, %v1711
    %v1713 = vrot.slane %v1214, %v1712
    %v1714 = vlaneseq
    %v1715 = vshrl.u32 %v1714, 7
    %v1716 = vsub.s32 0, %v1715
    %v1717 = vrot.slane %v1222, %v1716
    %v1718 = vlaneseq
    %v1719 = vshrl.u32 %v1718, 7
    %v1720 = vsub.s32 0, %v1719
    %v1721 = vrot.slane %v1224, %v1720
    %v1722 = vlaneseq
    %v1723 = vshrl.u32 %v1722, 7
    %v1724 = vsub.s32 0, %v1723
    %v1725 = vrot.slane %v1207, %v1724
    %v1726 = vlaneseq
    %v1727 = vshrl.u32 %v1726, 7
    %v1728 = vsub.s32 0, %v1727
    %v1729 = vrot.slane %v1221, %v1728
    %v1730 = vlaneseq
    %v1731 = vshrl.u32 %v1730, 7
    %v1732 = vsub.s32 0, %v1731
    %v1733 = vrot.slane %v1223, %v1732
    %v1734 = vlaneseq
    %v1735 = vshrl.u32 %v1734, 7
    %v1736 = vsub.s32 0, %v1735
    %v1737 = vrot.slane %v1225, %v1736
    %v1866 = vmul.f32 %v1229, %v418
    %v1867 = vmul.f32 %v1233, %v418
    %v1868 = vmul.f32 %v1237, %v418
    %v1869 = vmul.f32 %v1241, %v418
    %v1870 = vmul.f32 %v1245, %v418
    %v1871 = vmul.f32 %v1249, %v418
    %v1872 = vmul.f32 %v1253, %v418
    %v1873 = vmul.f32 %v1257, %v418
    %v1874 = vmul.f32 %v1261, %v418
    %v1875 = vmul.f32 %v1265, %v418
    %v1876 = vmul.f32 %v1269, %v418
    %v1877 = vmul.f32 %v1273, %v418
    %v1878 = vmul.f32 %v1277, %v418
    %v1879 = vmul.f32 %v1281, %v418
    %v1880 = vmul.f32 %v1285, %v418
    %v1881 = vmul.f32 %v1289, %v418
    %v1882 = vmul.f32 %v1293, %v419
    %v1883 = vmul.f32 %v1297, %v419
    %v1884 = vmul.f32 %v1301, %v419
    %v1885 = vmul.f32 %v1305, %v419
    %v1886 = vmul.f32 %v1309, %v419
    %v1887 = vmul.f32 %v1313, %v419
    %v1888 = vmul.f32 %v1317, %v419
    %v1889 = vmul.f32 %v1321, %v419
    %v1890 = vmul.f32 %v1325, %v419
    %v1891 = vmul.f32 %v1329, %v419
    %v1892 = vmul.f32 %v1333, %v419
    %v1893 = vmul.f32 %v1337, %v419
    %v1894 = vmul.f32 %v1341, %v419
    %v1895 = vmul.f32 %v1345, %v419
    %v1896 = vmul.f32 %v1349, %v419
    %v1897 = vmul.f32 %v1353, %v419
    %v1898 = vmul.f32 %v1357, %v420
    %v1899 = vmul.f32 %v1361, %v420
    %v1900 = vmul.f32 %v1365, %v420
    %v1901 = vmul.f32 %v1369, %v420
    %v1902 = vmul.f32 %v1373, %v420
    %v1903 = vmul.f32 %v1377, %v420
    %v1904 = vmul.f32 %v1381, %v420
    %v1905 = vmul.f32 %v1385, %v420
    %v1906 = vmul.f32 %v1389, %v420
    %v1907 = vmul.f32 %v1393, %v420
    %v1908 = vmul.f32 %v1397, %v420
    %v1909 = vmul.f32 %v1401, %v420
    %v1910 = vmul.f32 %v1405, %v420
    %v1911 = vmul.f32 %v1409, %v420
    %v1912 = vmul.f32 %v1413, %v420
    %v1913 = vmul.f32 %v1417, %v420
    %v1914 = vmul.f32 %v1421, %v421
    %v1915 = vmul.f32 %v1425, %v421
    %v1916 = vmul.f32 %v1429, %v421
    %v1917 = vmul.f32 %v1433, %v421
    %v1918 = vmul.f32 %v1437, %v421
    %v1919 = vmul.f32 %v1441, %v421
    %v1920 = vmul.f32 %v1445, %v421
    %v1921 = vmul.f32 %v1449, %v421
    %v1922 = vmul.f32 %v1453, %v421
    %v1923 = vmul.f32 %v1457, %v421
    %v1924 = vmul.f32 %v1461, %v421
    %v1925 = vmul.f32 %v1465, %v421
    %v1926 = vmul.f32 %v1469, %v421
    %v1927 = vmul.f32 %v1473, %v421
    %v1928 = vmul.f32 %v1477, %v421
    %v1929 = vmul.f32 %v1481, %v421
    %v1930 = vmul.f32 %v1485, %v422
    %v1931 = vmul.f32 %v1489, %v422
    %v1932 = vmul.f32 %v1493, %v422
    %v1933 = vmul.f32 %v1497, %v422
    %v1934 = vmul.f32 %v1501, %v422
    %v1935 = vmul.f32 %v1505, %v422
    %v1936 = vmul.f32 %v1509, %v422
    %v1937 = vmul.f32 %v1513, %v422
    %v1938 = vmul.f32 %v1517, %v422
    %v1939 = vmul.f32 %v1521, %v422
    %v1940 = vmul.f32 %v1525, %v422
    %v1941 = vmul.f32 %v1529, %v422
    %v1942 = vmul.f32 %v1533, %v422
    %v1943 = vmul.f32 %v1537, %v422
    %v1944 = vmul.f32 %v1541, %v422
    %v1945 = vmul.f32 %v1545, %v422
    %v1946 = vmul.f32 %v1549, %v423
    %v1947 = vmul.f32 %v1553, %v423
    %v1948 = vmul.f32 %v1557, %v423
    %v1949 = vmul.f32 %v1561, %v423
    %v1950 = vmul.f32 %v1565, %v423
    %v1951 = vmul.f32 %v1569, %v423
    %v1952 = vmul.f32 %v1573, %v423
    %v1953 = vmul.f32 %v1577, %v423
    %v1954 = vmul.f32 %v1581, %v423
    %v1955 = vmul.f32 %v1585, %v423
    %v1956 = vmul.f32 %v1589, %v423
    %v1957 = vmul.f32 %v1593, %v423
    %v1958 = vmul.f32 %v1597, %v423
    %v1959 = vmul.f32 %v1601, %v423
    %v1960 = vmul.f32 %v1605, %v423
    %v1961 = vmul.f32 %v1609, %v423
    %v1962 = vmul.f32 %v1613, %v424
    %v1963 = vmul.f32 %v1617, %v424
    %v1964 = vmul.f32 %v1621, %v424
    %v1965 = vmul.f32 %v1625, %v424
    %v1966 = vmul.f32 %v1629, %v424
    %v1967 = vmul.f32 %v1633, %v424
    %v1968 = vmul.f32 %v1637, %v424
    %v1969 = vmul.f32 %v1641, %v424
    %v1970 = vmul.f32 %v1645, %v424
    %v1971 = vmul.f32 %v1649, %v424
    %v1972 = vmul.f32 %v1653, %v424
    %v1973 = vmul.f32 %v1657, %v424
    %v1974 = vmul.f32 %v1661, %v424
    %v1975 = vmul.f32 %v1665, %v424
    %v1976 = vmul.f32 %v1669, %v424
    %v1977 = vmul.f32 %v1673, %v424
    %v1978 = vmul.f32 %v1677, %v425
    %v1979 = vmul.f32 %v1681, %v425
    %v1980 = vmul.f32 %v1685, %v425
    %v1981 = vmul.f32 %v1689, %v425
    %v1982 = vmul.f32 %v1693, %v425
    %v1983 = vmul.f32 %v1697, %v425
    %v1984 = vmul.f32 %v1701, %v425
    %v1985 = vmul.f32 %v1705, %v425
    %v1986 = vmul.f32 %v1709, %v425
    %v1987 = vmul.f32 %v1713, %v425
    %v1988 = vmul.f32 %v1717, %v425
    %v1989 = vmul.f32 %v1721, %v425
    %v1990 = vmul.f32 %v1725, %v425
    %v1991 = vmul.f32 %v1729, %v425
    %v1992 = vmul.f32 %v1733, %v425
    %v1993 = vmul.f32 %v1737, %v425
    %v1994 = vld [vmem:[%s7] sm:$0x3]
    %vm1995 = vcmask 392192
    %v1997 = vsel %vm1995, %v1994, 0
    %v2000 = vsel %vm1995, %v1866, 0
    %v2003 = vsel %vm1995, %v1867, 0
    %v2006 = vsel %vm1995, %v1868, 0
    %v2009 = vsel %vm1995, %v1869, 0
    %v2012 = vsel %vm1995, %v1870, 0
    %v2015 = vsel %vm1995, %v1871, 0
    %v2018 = vsel %vm1995, %v1872, 0
    %v2021 = vsel %vm1995, %v1873, 0
    %v2024 = vsel %vm1995, %v1874, 0
    %v2027 = vsel %vm1995, %v1875, 0
    %v2030 = vsel %vm1995, %v1876, 0
    %v2033 = vsel %vm1995, %v1877, 0
    %v2036 = vsel %vm1995, %v1878, 0
    %v2039 = vsel %vm1995, %v1879, 0
    %v2042 = vsel %vm1995, %v1880, 0
    %v2045 = vsel %vm1995, %v1881, 0
    %v2048 = vsel %vm1995, %v1882, 0
    %v2051 = vsel %vm1995, %v1883, 0
    %v2054 = vsel %vm1995, %v1884, 0
    %v2057 = vsel %vm1995, %v1885, 0
    %v2060 = vsel %vm1995, %v1886, 0
    %v2063 = vsel %vm1995, %v1887, 0
    %v2066 = vsel %vm1995, %v1888, 0
    %v2069 = vsel %vm1995, %v1889, 0
    %v2072 = vsel %vm1995, %v1890, 0
    %v2075 = vsel %vm1995, %v1891, 0
    %v2078 = vsel %vm1995, %v1892, 0
    %v2081 = vsel %vm1995, %v1893, 0
    %v2084 = vsel %vm1995, %v1894, 0
    %v2087 = vsel %vm1995, %v1895, 0
    %v2090 = vsel %vm1995, %v1896, 0
    %v2093 = vsel %vm1995, %v1897, 0
    %v2096 = vsel %vm1995, %v1898, 0
    %v2099 = vsel %vm1995, %v1899, 0
    %v2102 = vsel %vm1995, %v1900, 0
    %v2105 = vsel %vm1995, %v1901, 0
    %v2108 = vsel %vm1995, %v1902, 0
    %v2111 = vsel %vm1995, %v1903, 0
    %v2114 = vsel %vm1995, %v1904, 0
    %v2117 = vsel %vm1995, %v1905, 0
    %v2120 = vsel %vm1995, %v1906, 0
    %v2123 = vsel %vm1995, %v1907, 0
    %v2126 = vsel %vm1995, %v1908, 0
    %v2129 = vsel %vm1995, %v1909, 0
    %v2132 = vsel %vm1995, %v1910, 0
    %v2135 = vsel %vm1995, %v1911, 0
    %v2138 = vsel %vm1995, %v1912, 0
    %v2141 = vsel %vm1995, %v1913, 0
    %v2144 = vsel %vm1995, %v1914, 0
    %v2147 = vsel %vm1995, %v1915, 0
    %v2150 = vsel %vm1995, %v1916, 0
    %v2153 = vsel %vm1995, %v1917, 0
    %v2156 = vsel %vm1995, %v1918, 0
    %v2159 = vsel %vm1995, %v1919, 0
    %v2162 = vsel %vm1995, %v1920, 0
    %v2165 = vsel %vm1995, %v1921, 0
    %v2168 = vsel %vm1995, %v1922, 0
    %v2171 = vsel %vm1995, %v1923, 0
    %v2174 = vsel %vm1995, %v1924, 0
    %v2177 = vsel %vm1995, %v1925, 0
    %v2180 = vsel %vm1995, %v1926, 0
    %v2183 = vsel %vm1995, %v1927, 0
    %v2186 = vsel %vm1995, %v1928, 0
    %v2189 = vsel %vm1995, %v1929, 0
    %v2192 = vsel %vm1995, %v1930, 0
    %v2195 = vsel %vm1995, %v1931, 0
    %v2198 = vsel %vm1995, %v1932, 0
    %v2201 = vsel %vm1995, %v1933, 0
    %v2204 = vsel %vm1995, %v1934, 0
    %v2207 = vsel %vm1995, %v1935, 0
    %v2210 = vsel %vm1995, %v1936, 0
    %v2213 = vsel %vm1995, %v1937, 0
    %v2216 = vsel %vm1995, %v1938, 0
    %v2219 = vsel %vm1995, %v1939, 0
    %v2222 = vsel %vm1995, %v1940, 0
    %v2225 = vsel %vm1995, %v1941, 0
    %v2228 = vsel %vm1995, %v1942, 0
    %v2231 = vsel %vm1995, %v1943, 0
    %v2234 = vsel %vm1995, %v1944, 0
    %v2237 = vsel %vm1995, %v1945, 0
    %v2240 = vsel %vm1995, %v1946, 0
    %v2243 = vsel %vm1995, %v1947, 0
    %v2246 = vsel %vm1995, %v1948, 0
    %v2249 = vsel %vm1995, %v1949, 0
    %v2252 = vsel %vm1995, %v1950, 0
    %v2255 = vsel %vm1995, %v1951, 0
    %v2258 = vsel %vm1995, %v1952, 0
    %v2261 = vsel %vm1995, %v1953, 0
    %v2264 = vsel %vm1995, %v1954, 0
    %v2267 = vsel %vm1995, %v1955, 0
    %v2270 = vsel %vm1995, %v1956, 0
    %v2273 = vsel %vm1995, %v1957, 0
    %v2276 = vsel %vm1995, %v1958, 0
    %v2279 = vsel %vm1995, %v1959, 0
    %v2282 = vsel %vm1995, %v1960, 0
    %v2285 = vsel %vm1995, %v1961, 0
    %v2288 = vsel %vm1995, %v1962, 0
    %v2291 = vsel %vm1995, %v1963, 0
    %v2294 = vsel %vm1995, %v1964, 0
    %v2297 = vsel %vm1995, %v1965, 0
    %v2300 = vsel %vm1995, %v1966, 0
    %v2303 = vsel %vm1995, %v1967, 0
    %v2306 = vsel %vm1995, %v1968, 0
    %v2309 = vsel %vm1995, %v1969, 0
    %v2312 = vsel %vm1995, %v1970, 0
    %v2315 = vsel %vm1995, %v1971, 0
    %v2318 = vsel %vm1995, %v1972, 0
    %v2321 = vsel %vm1995, %v1973, 0
    %v2324 = vsel %vm1995, %v1974, 0
    %v2327 = vsel %vm1995, %v1975, 0
    %v2330 = vsel %vm1995, %v1976, 0
    %v2333 = vsel %vm1995, %v1977, 0
    %v2336 = vsel %vm1995, %v1978, 0
    %v2339 = vsel %vm1995, %v1979, 0
    %v2342 = vsel %vm1995, %v1980, 0
    %v2345 = vsel %vm1995, %v1981, 0
    %v2348 = vsel %vm1995, %v1982, 0
    %v2351 = vsel %vm1995, %v1983, 0
    %v2354 = vsel %vm1995, %v1984, 0
    %v2357 = vsel %vm1995, %v1985, 0
    %v2360 = vsel %vm1995, %v1986, 0
    %v2363 = vsel %vm1995, %v1987, 0
    %v2366 = vsel %vm1995, %v1988, 0
    %v2369 = vsel %vm1995, %v1989, 0
    %v2372 = vsel %vm1995, %v1990, 0
    %v2375 = vsel %vm1995, %v1991, 0
    %v2378 = vsel %vm1995, %v1992, 0
    %v2381 = vsel %vm1995, %v1993, 0
    %2383 = vmatprep.subr.mxu0 0.0
    %2384 = vmatpush1.xpose.msra.mxu0 %v2000
    %2385 = vmatprep.subr.mxu0 0.0
    %2386 = vmatpush1.xpose.msra.mxu0 %v2003
    %2387 = vmatprep.subr.mxu0 0.0
    %2388 = vmatpush1.xpose.msra.mxu0 %v2006
    %2389 = vmatprep.subr.mxu0 0.0
    %2390 = vmatpush1.xpose.msra.mxu0 %v2009
    %2391 = vmatprep.subr.mxu0 0.0
    %2392 = vmatpush1.xpose.msra.mxu0 %v2012
    %2393 = vmatprep.subr.mxu0 0.0
    %2394 = vmatpush1.xpose.msra.mxu0 %v2015
    %2395 = vmatprep.subr.mxu0 0.0
    %2396 = vmatpush1.xpose.msra.mxu0 %v2018
    %2397 = vmatprep.subr.mxu0 0.0
    %2398 = vmatpush1.xpose.msra.mxu0 %v2021
    %2399 = vmatprep.subr.mxu0 0.0
    %2400 = vmatpush1.xpose.msra.mxu0 %v2024
    %2401 = vmatprep.subr.mxu0 0.0
    %2402 = vmatpush1.xpose.msra.mxu0 %v2027
    %2403 = vmatprep.subr.mxu0 0.0
    %2404 = vmatpush1.xpose.msra.mxu0 %v2030
    %2405 = vmatprep.subr.mxu0 0.0
    %2406 = vmatpush1.xpose.msra.mxu0 %v2033
    %2407 = vmatprep.subr.mxu0 0.0
    %2408 = vmatpush1.xpose.msra.mxu0 %v2036
    %2409 = vmatprep.subr.mxu0 0.0
    %2410 = vmatpush1.xpose.msra.mxu0 %v2039
    %2411 = vmatprep.subr.mxu0 0.0
    %2412 = vmatpush1.xpose.msra.mxu0 %v2042
    %2413 = vmatprep.subr.mxu0 0.0
    %2414 = vmatpush1.xpose.msra.mxu0 %v2045
    %2415 = vmatprep.subr.mxu0 0.0
    %2416 = vmatpush1.xpose.msra.mxu0 %v2048
    %2417 = vmatprep.subr.mxu0 0.0
    %2418 = vmatpush1.xpose.msra.mxu0 %v2051
    %2419 = vmatprep.subr.mxu0 0.0
    %2420 = vmatpush1.xpose.msra.mxu0 %v2054
    %2421 = vmatprep.subr.mxu0 0.0
    %2422 = vmatpush1.xpose.msra.mxu0 %v2057
    %2423 = vmatprep.subr.mxu0 0.0
    %2424 = vmatpush1.xpose.msra.mxu0 %v2060
    %2425 = vmatprep.subr.mxu0 0.0
    %2426 = vmatpush1.xpose.msra.mxu0 %v2063
    %2427 = vmatprep.subr.mxu0 0.0
    %2428 = vmatpush1.xpose.msra.mxu0 %v2066
    %2429 = vmatprep.subr.mxu0 0.0
    %2430 = vmatpush1.xpose.msra.mxu0 %v2069
    %2431 = vmatprep.subr.mxu0 0.0
    %2432 = vmatpush1.xpose.msra.mxu0 %v2072
    %2433 = vmatprep.subr.mxu0 0.0
    %2434 = vmatpush1.xpose.msra.mxu0 %v2075
    %2435 = vmatprep.subr.mxu0 0.0
    %2436 = vmatpush1.xpose.msra.mxu0 %v2078
    %2437 = vmatprep.subr.mxu0 0.0
    %2438 = vmatpush1.xpose.msra.mxu0 %v2081
    %2439 = vmatprep.subr.mxu0 0.0
    %2440 = vmatpush1.xpose.msra.mxu0 %v2084
    %2441 = vmatprep.subr.mxu0 0.0
    %2442 = vmatpush1.xpose.msra.mxu0 %v2087
    %2443 = vmatprep.subr.mxu0 0.0
    %2444 = vmatpush1.xpose.msra.mxu0 %v2090
    %2445 = vmatprep.subr.mxu0 0.0
    %2446 = vmatpush1.xpose.msra.mxu0 %v2093
    %2447 = vmatprep.mubr.f32.mxu0 0.0
    %2448 = vmatmul.mubr.f32.gmra.mrb[0].mxu0 %v1997
    %v2449 = vpop.f32.mrb[0].mxu0
    %v2450 = vadd.f32 0.0, %v2449
    %v2451 = vpop.f32.mrb[0].mxu0
    %v2452 = vadd.f32 0.0, %v2451
    %2453 = vdwg.mxu0
    %2454 = vmatprep.subr.mxu0 0.0
    %2455 = vmatpush1.xpose.msra.mxu0 %v2096
    %2456 = vmatprep.subr.mxu0 0.0
    %2457 = vmatpush1.xpose.msra.mxu0 %v2099
    %2458 = vmatprep.subr.mxu0 0.0
    %2459 = vmatpush1.xpose.msra.mxu0 %v2102
    %2460 = vmatprep.subr.mxu0 0.0
    %2461 = vmatpush1.xpose.msra.mxu0 %v2105
    %2462 = vmatprep.subr.mxu0 0.0
    %2463 = vmatpush1.xpose.msra.mxu0 %v2108
    %2464 = vmatprep.subr.mxu0 0.0
    %2465 = vmatpush1.xpose.msra.mxu0 %v2111
    %2466 = vmatprep.subr.mxu0 0.0
    %2467 = vmatpush1.xpose.msra.mxu0 %v2114
    %2468 = vmatprep.subr.mxu0 0.0
    %2469 = vmatpush1.xpose.msra.mxu0 %v2117
    %2470 = vmatprep.subr.mxu0 0.0
    %2471 = vmatpush1.xpose.msra.mxu0 %v2120
    %2472 = vmatprep.subr.mxu0 0.0
    %2473 = vmatpush1.xpose.msra.mxu0 %v2123
    %2474 = vmatprep.subr.mxu0 0.0
    %2475 = vmatpush1.xpose.msra.mxu0 %v2126
    %2476 = vmatprep.subr.mxu0 0.0
    %2477 = vmatpush1.xpose.msra.mxu0 %v2129
    %2478 = vmatprep.subr.mxu0 0.0
    %2479 = vmatpush1.xpose.msra.mxu0 %v2132
    %2480 = vmatprep.subr.mxu0 0.0
    %2481 = vmatpush1.xpose.msra.mxu0 %v2135
    %2482 = vmatprep.subr.mxu0 0.0
    %2483 = vmatpush1.xpose.msra.mxu0 %v2138
    %2484 = vmatprep.subr.mxu0 0.0
    %2485 = vmatpush1.xpose.msra.mxu0 %v2141
    %2486 = vmatprep.subr.mxu0 0.0
    %2487 = vmatpush1.xpose.msra.mxu0 %v2144
    %2488 = vmatprep.subr.mxu0 0.0
    %2489 = vmatpush1.xpose.msra.mxu0 %v2147
    %2490 = vmatprep.subr.mxu0 0.0
    %2491 = vmatpush1.xpose.msra.mxu0 %v2150
    %2492 = vmatprep.subr.mxu0 0.0
    %2493 = vmatpush1.xpose.msra.mxu0 %v2153
    %2494 = vmatprep.subr.mxu0 0.0
    %2495 = vmatpush1.xpose.msra.mxu0 %v2156
    %2496 = vmatprep.subr.mxu0 0.0
    %2497 = vmatpush1.xpose.msra.mxu0 %v2159
    %2498 = vmatprep.subr.mxu0 0.0
    %2499 = vmatpush1.xpose.msra.mxu0 %v2162
    %2500 = vmatprep.subr.mxu0 0.0
    %2501 = vmatpush1.xpose.msra.mxu0 %v2165
    %2502 = vmatprep.subr.mxu0 0.0
    %2503 = vmatpush1.xpose.msra.mxu0 %v2168
    %2504 = vmatprep.subr.mxu0 0.0
    %2505 = vmatpush1.xpose.msra.mxu0 %v2171
    %2506 = vmatprep.subr.mxu0 0.0
    %2507 = vmatpush1.xpose.msra.mxu0 %v2174
    %2508 = vmatprep.subr.mxu0 0.0
    %2509 = vmatpush1.xpose.msra.mxu0 %v2177
    %2510 = vmatprep.subr.mxu0 0.0
    %2511 = vmatpush1.xpose.msra.mxu0 %v2180
    %2512 = vmatprep.subr.mxu0 0.0
    %2513 = vmatpush1.xpose.msra.mxu0 %v2183
    %2514 = vmatprep.subr.mxu0 0.0
    %2515 = vmatpush1.xpose.msra.mxu0 %v2186
    %2516 = vmatprep.subr.mxu0 0.0
    %2517 = vmatpush1.xpose.msra.mxu0 %v2189
    %2518 = vmatprep.mubr.f32.mxu0 0.0
    %2519 = vmatmul.mubr.f32.gmra.mrb[0].mxu0 %v1997
    %v2520 = vpop.f32.mrb[0].mxu0
    %v2521 = vadd.f32 0.0, %v2520
    %v2522 = vpop.f32.mrb[0].mxu0
    %v2523 = vadd.f32 0.0, %v2522
    %2524 = vdwg.mxu0
    %2525 = vmatprep.subr.mxu0 0.0
    %2526 = vmatpush1.xpose.msra.mxu0 %v2192
    %2527 = vmatprep.subr.mxu0 0.0
    %2528 = vmatpush1.xpose.msra.mxu0 %v2195
    %2529 = vmatprep.subr.mxu0 0.0
    %2530 = vmatpush1.xpose.msra.mxu0 %v2198
    %2531 = vmatprep.subr.mxu0 0.0
    %2532 = vmatpush1.xpose.msra.mxu0 %v2201
    %2533 = vmatprep.subr.mxu0 0.0
    %2534 = vmatpush1.xpose.msra.mxu0 %v2204
    %2535 = vmatprep.subr.mxu0 0.0
    %2536 = vmatpush1.xpose.msra.mxu0 %v2207
    %2537 = vmatprep.subr.mxu0 0.0
    %2538 = vmatpush1.xpose.msra.mxu0 %v2210
    %2539 = vmatprep.subr.mxu0 0.0
    %2540 = vmatpush1.xpose.msra.mxu0 %v2213
    %2541 = vmatprep.subr.mxu0 0.0
    %2542 = vmatpush1.xpose.msra.mxu0 %v2216
    %2543 = vmatprep.subr.mxu0 0.0
    %2544 = vmatpush1.xpose.msra.mxu0 %v2219
    %2545 = vmatprep.subr.mxu0 0.0
    %2546 = vmatpush1.xpose.msra.mxu0 %v2222
    %2547 = vmatprep.subr.mxu0 0.0
    %2548 = vmatpush1.xpose.msra.mxu0 %v2225
    %2549 = vmatprep.subr.mxu0 0.0
    %2550 = vmatpush1.xpose.msra.mxu0 %v2228
    %2551 = vmatprep.subr.mxu0 0.0
    %2552 = vmatpush1.xpose.msra.mxu0 %v2231
    %2553 = vmatprep.subr.mxu0 0.0
    %2554 = vmatpush1.xpose.msra.mxu0 %v2234
    %2555 = vmatprep.subr.mxu0 0.0
    %2556 = vmatpush1.xpose.msra.mxu0 %v2237
    %2557 = vmatprep.subr.mxu0 0.0
    %2558 = vmatpush1.xpose.msra.mxu0 %v2240
    %2559 = vmatprep.subr.mxu0 0.0
    %2560 = vmatpush1.xpose.msra.mxu0 %v2243
    %2561 = vmatprep.subr.mxu0 0.0
    %2562 = vmatpush1.xpose.msra.mxu0 %v2246
    %2563 = vmatprep.subr.mxu0 0.0
    %2564 = vmatpush1.xpose.msra.mxu0 %v2249
    %2565 = vmatprep.subr.mxu0 0.0
    %2566 = vmatpush1.xpose.msra.mxu0 %v2252
    %2567 = vmatprep.subr.mxu0 0.0
    %2568 = vmatpush1.xpose.msra.mxu0 %v2255
    %2569 = vmatprep.subr.mxu0 0.0
    %2570 = vmatpush1.xpose.msra.mxu0 %v2258
    %2571 = vmatprep.subr.mxu0 0.0
    %2572 = vmatpush1.xpose.msra.mxu0 %v2261
    %2573 = vmatprep.subr.mxu0 0.0
    %2574 = vmatpush1.xpose.msra.mxu0 %v2264
    %2575 = vmatprep.subr.mxu0 0.0
    %2576 = vmatpush1.xpose.msra.mxu0 %v2267
    %2577 = vmatprep.subr.mxu0 0.0
    %2578 = vmatpush1.xpose.msra.mxu0 %v2270
    %2579 = vmatprep.subr.mxu0 0.0
    %2580 = vmatpush1.xpose.msra.mxu0 %v2273
    %2581 = vmatprep.subr.mxu0 0.0
    %2582 = vmatpush1.xpose.msra.mxu0 %v2276
    %2583 = vmatprep.subr.mxu0 0.0
    %2584 = vmatpush1.xpose.msra.mxu0 %v2279
    %2585 = vmatprep.subr.mxu0 0.0
    %2586 = vmatpush1.xpose.msra.mxu0 %v2282
    %2587 = vmatprep.subr.mxu0 0.0
    %2588 = vmatpush1.xpose.msra.mxu0 %v2285
    %2589 = vmatprep.mubr.f32.mxu0 0.0
    %2590 = vmatmul.mubr.f32.gmra.mrb[0].mxu0 %v1997
    %v2591 = vpop.f32.mrb[0].mxu0
    %v2592 = vadd.f32 0.0, %v2591
    %v2593 = vpop.f32.mrb[0].mxu0
    %v2594 = vadd.f32 0.0, %v2593
    %2595 = vdwg.mxu0
    %2596 = vmatprep.subr.mxu0 0.0
    %2597 = vmatpush1.xpose.msra.mxu0 %v2288
    %2598 = vmatprep.subr.mxu0 0.0
    %2599 = vmatpush1.xpose.msra.mxu0 %v2291
    %2600 = vmatprep.subr.mxu0 0.0
    %2601 = vmatpush1.xpose.msra.mxu0 %v2294
    %2602 = vmatprep.subr.mxu0 0.0
    %2603 = vmatpush1.xpose.msra.mxu0 %v2297
    %2604 = vmatprep.subr.mxu0 0.0
    %2605 = vmatpush1.xpose.msra.mxu0 %v2300
    %2606 = vmatprep.subr.mxu0 0.0
    %2607 = vmatpush1.xpose.msra.mxu0 %v2303
    %2608 = vmatprep.subr.mxu0 0.0
    %2609 = vmatpush1.xpose.msra.mxu0 %v2306
    %2610 = vmatprep.subr.mxu0 0.0
    %2611 = vmatpush1.xpose.msra.mxu0 %v2309
    %2612 = vmatprep.subr.mxu0 0.0
    %2613 = vmatpush1.xpose.msra.mxu0 %v2312
    %2614 = vmatprep.subr.mxu0 0.0
    %2615 = vmatpush1.xpose.msra.mxu0 %v2315
    %2616 = vmatprep.subr.mxu0 0.0
    %2617 = vmatpush1.xpose.msra.mxu0 %v2318
    %2618 = vmatprep.subr.mxu0 0.0
    %2619 = vmatpush1.xpose.msra.mxu0 %v2321
    %2620 = vmatprep.subr.mxu0 0.0
    %2621 = vmatpush1.xpose.msra.mxu0 %v2324
    %2622 = vmatprep.subr.mxu0 0.0
    %2623 = vmatpush1.xpose.msra.mxu0 %v2327
    %2624 = vmatprep.subr.mxu0 0.0
    %2625 = vmatpush1.xpose.msra.mxu0 %v2330
    %2626 = vmatprep.subr.mxu0 0.0
    %2627 = vmatpush1.xpose.msra.mxu0 %v2333
    %2628 = vmatprep.subr.mxu0 0.0
    %2629 = vmatpush1.xpose.msra.mxu0 %v2336
    %2630 = vmatprep.subr.mxu0 0.0
    %2631 = vmatpush1.xpose.msra.mxu0 %v2339
    %2632 = vmatprep.subr.mxu0 0.0
    %2633 = vmatpush1.xpose.msra.mxu0 %v2342
    %2634 = vmatprep.subr.mxu0 0.0
    %2635 = vmatpush1.xpose.msra.mxu0 %v2345
    %2636 = vmatprep.subr.mxu0 0.0
    %2637 = vmatpush1.xpose.msra.mxu0 %v2348
    %2638 = vmatprep.subr.mxu0 0.0
    %2639 = vmatpush1.xpose.msra.mxu0 %v2351
    %2640 = vmatprep.subr.mxu0 0.0
    %2641 = vmatpush1.xpose.msra.mxu0 %v2354
    %2642 = vmatprep.subr.mxu0 0.0
    %2643 = vmatpush1.xpose.msra.mxu0 %v2357
    %2644 = vmatprep.subr.mxu0 0.0
    %2645 = vmatpush1.xpose.msra.mxu0 %v2360
    %2646 = vmatprep.subr.mxu0 0.0
    %2647 = vmatpush1.xpose.msra.mxu0 %v2363
    %2648 = vmatprep.subr.mxu0 0.0
    %2649 = vmatpush1.xpose.msra.mxu0 %v2366
    %2650 = vmatprep.subr.mxu0 0.0
    %2651 = vmatpush1.xpose.msra.mxu0 %v2369
    %2652 = vmatprep.subr.mxu0 0.0
    %2653 = vmatpush1.xpose.msra.mxu0 %v2372
    %2654 = vmatprep.subr.mxu0 0.0
    %2655 = vmatpush1.xpose.msra.mxu0 %v2375
    %2656 = vmatprep.subr.mxu0 0.0
    %2657 = vmatpush1.xpose.msra.mxu0 %v2378
    %2658 = vmatprep.subr.mxu0 0.0
    %2659 = vmatpush1.xpose.msra.mxu0 %v2381
    %2660 = vmatprep.mubr.f32.mxu0 0.0
    %2661 = vmatmul.mubr.f32.gmra.mrb[0].mxu0 %v1997
    %v2662 = vpop.f32.mrb[0].mxu0
    %v2663 = vadd.f32 0.0, %v2662
    %v2664 = vpop.f32.mrb[0].mxu0
    %v2665 = vadd.f32 0.0, %v2664
    %2666 = vdwg.mxu0
    %v2667 = vld [vmem:[%s2] sm:$0x3]
    %v2668 = vadd.f32 %v2450, %v2667
    %2669 = vst [vmem:[#allocation4] sm:$0x3] %v2668
    %vm2670 = vcmask 1041408
    %v2671 = vsel %vm2670, %v2668, -inf
    %2672 = vmax.xlane.f32.xlu0 %v2671
    %v2673 = vpop.xlane.xlu0 %2672
    %v2674 = vsub.f32 %v2668, %v2673
    %v2675 = vmul.f32 %v2674, 1.442695
    %v2676 = vpow.pop %v2675
    %v2677 = vsel %vm2670, %v2676, 0.0
    %2678 = vadd.xlane.f32.xlu0 %v2677
    %v2679 = vpop.xlane.xlu0 %2678
    %v2680 = vrcp.pop %v2679
    %v2681 = vmul.f32 %v2676, %v2680
    %2682 = vst [vmem:[#allocation2] sm:$0x3] %v2681
    %v2683 = vld [vmem:[%s2 + $0x2] sm:$0x3]
    %v2684 = vadd.f32 %v2452, %v2683
    %2685 = vst [vmem:[#allocation4 + $0x2] sm:$0x3] %v2684
    %v2686 = vsel %vm2670, %v2684, -inf
    %2687 = vmax.xlane.f32.xlu0 %v2686
    %v2688 = vpop.xlane.xlu0 %2687
    %v2689 = vsub.f32 %v2684, %v2688
    %v2690 = vmul.f32 %v2689, 1.442695
    %v2691 = vpow.pop %v2690
    %v2692 = vsel %vm2670, %v2691, 0.0
    %2693 = vadd.xlane.f32.xlu0 %v2692
    %v2694 = vpop.xlane.xlu0 %2693
    %v2695 = vrcp.pop %v2694
    %v2696 = vmul.f32 %v2691, %v2695
    %2697 = vst [vmem:[#allocation2 + $0x2] sm:$0x3] %v2696
    %v2698 = vld [vmem:[%s2 + $0x4] sm:$0x3]
    %v2699 = vadd.f32 %v2521, %v2698
    %2700 = vst [vmem:[#allocation4 + $0x4] sm:$0x3] %v2699
    %v2701 = vsel %vm2670, %v2699, -inf
    %2702 = vmax.xlane.f32.xlu0 %v2701
    %v2703 = vpop.xlane.xlu0 %2702
    %v2704 = vsub.f32 %v2699, %v2703
    %v2705 = vmul.f32 %v2704, 1.442695
    %v2706 = vpow.pop %v2705
    %v2707 = vsel %vm2670, %v2706, 0.0
    %2708 = vadd.xlane.f32.xlu0 %v2707
    %v2709 = vpop.xlane.xlu0 %2708
    %v2710 = vrcp.pop %v2709
    %v2711 = vmul.f32 %v2706, %v2710
    %2712 = vst [vmem:[#allocation2 + $0x4] sm:$0x3] %v2711
    %v2713 = vld [vmem:[%s2 + $0x6] sm:$0x3]
    %v2714 = vadd.f32 %v2523, %v2713
    %2715 = vst [vmem:[#allocation4 + $0x6] sm:$0x3] %v2714
    %v2716 = vsel %vm2670, %v2714, -inf
    %2717 = vmax.xlane.f32.xlu0 %v2716
    %v2718 = vpop.xlane.xlu0 %2717
    %v2719 = vsub.f32 %v2714, %v2718
    %v2720 = vmul.f32 %v2719, 1.442695
    %v2721 = vpow.pop %v2720
    %v2722 = vsel %vm2670, %v2721, 0.0
    %2723 = vadd.xlane.f32.xlu0 %v2722
    %v2724 = vpop.xlane.xlu0 %2723
    %v2725 = vrcp.pop %v2724
    %v2726 = vmul.f32 %v2721, %v2725
    %2727 = vst [vmem:[#allocation2 + $0x6] sm:$0x3] %v2726
    %v2728 = vld [vmem:[%s2 + $0x8] sm:$0x3]
    %v2729 = vadd.f32 %v2592, %v2728
    %2730 = vst [vmem:[#allocation4 + $0x8] sm:$0x3] %v2729
    %v2731 = vsel %vm2670, %v2729, -inf
    %2732 = vmax.xlane.f32.xlu0 %v2731
    %v2733 = vpop.xlane.xlu0 %2732
    %v2734 = vsub.f32 %v2729, %v2733
    %v2735 = vmul.f32 %v2734, 1.442695
    %v2736 = vpow.pop %v2735
    %v2737 = vsel %vm2670, %v2736, 0.0
    %2738 = vadd.xlane.f32.xlu0 %v2737
    %v2739 = vpop.xlane.xlu0 %2738
    %v2740 = vrcp.pop %v2739
    %v2741 = vmul.f32 %v2736, %v2740
    %2742 = vst [vmem:[#allocation2 + $0x8] sm:$0x3] %v2741
    %v2743 = vld [vmem:[%s2 + $0xa] sm:$0x3]
    %v2744 = vadd.f32 %v2594, %v2743
    %2745 = vst [vmem:[#allocation4 + $0xa] sm:$0x3] %v2744
    %v2746 = vsel %vm2670, %v2744, -inf
    %2747 = vmax.xlane.f32.xlu0 %v2746
    %v2748 = vpop.xlane.xlu0 %2747
    %v2749 = vsub.f32 %v2744, %v2748
    %v2750 = vmul.f32 %v2749, 1.442695
    %v2751 = vpow.pop %v2750
    %v2752 = vsel %vm2670, %v2751, 0.0
    %2753 = vadd.xlane.f32.xlu0 %v2752
    %v2754 = vpop.xlane.xlu0 %2753
    %v2755 = vrcp.pop %v2754
    %v2756 = vmul.f32 %v2751, %v2755
    %2757 = vst [vmem:[#allocation2 + $0xa] sm:$0x3] %v2756
    %v2758 = vld [vmem:[%s2 + $0xc] sm:$0x3]
    %v2759 = vadd.f32 %v2663, %v2758
    %2760 = vst [vmem:[#allocation4 + $0xc] sm:$0x3] %v2759
    %v2761 = vsel %vm2670, %v2759, -inf
    %2762 = vmax.xlane.f32.xlu0 %v2761
    %v2763 = vpop.xlane.xlu0 %2762
    %v2764 = vsub.f32 %v2759, %v2763
    %v2765 = vmul.f32 %v2764, 1.442695
    %v2766 = vpow.pop %v2765
    %v2767 = vsel %vm2670, %v2766, 0.0
    %2768 = vadd.xlane.f32.xlu0 %v2767
    %v2769 = vpop.xlane.xlu0 %2768
    %v2770 = vrcp.pop %v2769
    %v2771 = vmul.f32 %v2766, %v2770
    %2772 = vst [vmem:[#allocation2 + $0xc] sm:$0x3] %v2771
    %v2773 = vld [vmem:[%s2 + $0xe] sm:$0x3]
    %v2774 = vadd.f32 %v2665, %v2773
    %2775 = vst [vmem:[#allocation4 + $0xe] sm:$0x3] %v2774
    %v2776 = vsel %vm2670, %v2774, -inf
    %2777 = vmax.xlane.f32.xlu0 %v2776
    %v2778 = vpop.xlane.xlu0 %2777
    %v2779 = vsub.f32 %v2774, %v2778
    %v2780 = vmul.f32 %v2779, 1.442695
    %v2781 = vpow.pop %v2780
    %v2782 = vsel %vm2670, %v2781, 0.0
    %2783 = vadd.xlane.f32.xlu0 %v2782
    %v2784 = vpop.xlane.xlu0 %2783
    %v2785 = vrcp.pop %v2784
    %v2786 = vmul.f32 %v2781, %v2785
    %2787 = vst [vmem:[#allocation2 + $0xe] sm:$0x3] %v2786
    // Predicated region
    $region34: #{tpu_custom_call.1} parent=1 // pred_check
      _
    $region35: #{tpu_custom_call.1} parent=1 // pred_check_branch
      %2789 = sbr.rel (0) target = $region37
    $region36: #{tpu_custom_call.1} parent=1 // pred_region
      %s2791 = ssub.s32 256, 256
      %2792 = vsyncadd [#allocation3], %s2791
      %s2793 = sshll.u32 [#allocation2], 4
      %s2794 = int_to_ptr.vmem [resolvable:$true] %s2793
      %2799 = dma.vmem_to_hbm [thread:$0]  %s2794, 256, %s8, [#allocation3], 128, 128, 8
    $region37: #{tpu_custom_call.1} parent=1 // pred_fallthru
      _
    // Predicated region
    $region38: #{tpu_custom_call.1} parent=1 // pred_check
      _
    $region39: #{tpu_custom_call.1} parent=1 // pred_check_branch
      %2801 = sbr.rel (0) target = $region41
    $region40: #{tpu_custom_call.1} parent=1 // pred_region
      %s2803 = ssub.s32 256, 256
      %2804 = vsyncadd [#allocation5], %s2803
      %s2805 = sshll.u32 [#allocation4], 4
      %s2806 = int_to_ptr.vmem [resolvable:$true] %s2805
      %2811 = dma.vmem_to_hbm [thread:$0]  %s2806, 256, %s9, [#allocation5], 128, 128, 8
    $region41: #{tpu_custom_call.1} parent=1 // pred_fallthru
      _
    // Predicated region
    $region42: #{tpu_custom_call.1} parent=1 // pred_check
      _
    $region43: #{tpu_custom_call.1} parent=1 // pred_check_branch
      %2813 = sbr.rel (0) target = $region45
    $region44: #{tpu_custom_call.1} parent=1 // pred_region
      %2814 = dma.done [#allocation3], 256
    $region45: #{tpu_custom_call.1} parent=1 // pred_fallthru
      _
    // Predicated region
    $region46: #{tpu_custom_call.1} parent=1 // pred_check
      _
    $region47: #{tpu_custom_call.1} parent=1 // pred_check_branch
      %2816 = sbr.rel (0) target = $region49
    $region48: #{tpu_custom_call.1} parent=1 // pred_region
      %2817 = dma.done [#allocation5], 256
    $region49: #{tpu_custom_call.1} parent=1 // pred_fallthru
      _
    %2818 = vsyncpa [#allocation3], 1
    %2819 = vsyncpa [#allocation5], 1

</llo_original>
